<compile_context>
chip_gen: v7x
topology: tpu7x:2x2x1
jax: 0.10.0
libtpu: 0.0.40
codegen_flags: <defaults>
</compile_context>

<pallas_src>
import functools

import jax
import jax.numpy as jnp
from jax.experimental import pallas as pl
from jax.experimental.pallas import tpu as pltpu


def _tile(dim, target, align):
    """Largest multiple of `align` that divides `dim` and is <= `target`; else the full dim."""
    if dim <= target:
        return dim
    t = (target // align) * align
    while t >= align:
        if dim % t == 0:
            return t
        t -= align
    return dim


# ---------------------------------------------------------------------------
# Full-K (weight-strip resident) matmul kernels, f32 accumulation, optional
# fused LearnedDropout epilogue  y = y * (0.5*cos(A*y + B) + 0.5).
# ---------------------------------------------------------------------------

def _matmul_kernel(x_ref, w_ref, o_ref):
    o_ref[...] = jnp.dot(x_ref[...], w_ref[...],
                         preferred_element_type=jnp.float32).astype(o_ref.dtype)


def _matmul_mask_kernel(x_ref, w_ref, a_ref, b_ref, o_ref):
    y = jnp.dot(x_ref[...], w_ref[...], preferred_element_type=jnp.float32)
    mask = 0.5 * (jnp.cos(a_ref[...] * y + b_ref[...]) + 1.0)
    o_ref[...] = (y * mask).astype(o_ref.dtype)


def _matmul(x, w, a=None, b=None, *, out_dtype, tm_target=256, wstrip_bytes=8 << 20):
    """y = x @ w, full K per step (no reduction grid axis), optionally fused with
    y *= 0.5*cos(a*y + b) + 0.5 (a, b broadcast over rows)."""
    M, K = x.shape
    K2, N = w.shape
    assert K == K2
    itm = jnp.dtype(x.dtype).itemsize

    tm = _tile(M, tm_target, 8)
    # Keep one (K, tn) weight strip around `wstrip_bytes` so it is trivially VMEM resident.
    tn_cap = max(128, (wstrip_bytes // (K * itm)) // 128 * 128)
    tn = _tile(N, tn_cap, 128)
    grid = (M // tm, N // tn)

    in_specs = [
        pl.BlockSpec((tm, K), lambda i, j: (i, 0)),   # x row strip (resident across j sweep)
        pl.BlockSpec((K, tn), lambda i, j: (0, j)),   # weight column strip
    ]
    args = [x, w]
    if a is not None:
        in_specs += [pl.BlockSpec((1, tn), lambda i, j: (0, j)),
                     pl.BlockSpec((1, tn), lambda i, j: (0, j))]
        args += [a.reshape(1, N).astype(jnp.float32),
                 b.reshape(1, N).astype(jnp.float32)]
        kernel = _matmul_mask_kernel
    else:
        kernel = _matmul_kernel

    cost = pl.CostEstimate(
        flops=2 * M * N * K,
        transcendentals=(M * N) if a is not None else 0,
        bytes_accessed=(M * K + (M // tm) * K * N) * itm
        + M * N * jnp.dtype(out_dtype).itemsize,
    )
    return pl.pallas_call(
        kernel,
        out_shape=jax.ShapeDtypeStruct((M, N), out_dtype),
        grid=grid,
        in_specs=in_specs,
        out_specs=pl.BlockSpec((tm, tn), lambda i, j: (i, j)),
        compiler_params=pltpu.CompilerParams(
            dimension_semantics=("parallel", "parallel"),
            vmem_limit_bytes=64 * 1024 * 1024),
        cost_estimate=cost,
    )(*args)


# ---------------------------------------------------------------------------
# Causal attention + LearnedDropout #1, per (batch, head, q-block), with
# causal KV-tile skipping (exact softmax over the causal prefix only).
# ---------------------------------------------------------------------------

def _attn_kernel(q_ref, k_ref, v_ref, a1_ref, b1_ref, o_ref, s_buf, acc_ref, *,
                 tk, approx_recip, mask_dtype):
    tq, _ = q_ref.shape
    qi = pl.program_id(2)

    q = q_ref[...]                                   # (tq, hs); 1/sqrt(hs) folded into W_q
    n_kv = pl.cdiv((qi + 1) * tq, tk)                # key tiles needed for causal prefix
    row = qi * tq + jax.lax.broadcasted_iota(jnp.int32, (tq, 1), 0)

    # Phase 1: raw scores over the causal prefix -> s_buf; running row max.
    def scores(j, m):
        off = pl.multiple_of(j * tk, tk)
        s = jax.lax.dot_general(q, k_ref[pl.ds(off, tk), :],
                                (((1,), (1,)), ((), ())),
                                preferred_element_type=jnp.float32)   # (tq, tk)
        col = off + jax.lax.broadcasted_iota(jnp.int32, (1, tk), 1)
        s = jnp.where(col <= row, s, -jnp.inf)
        s_buf[j] = s
        return jnp.maximum(m, jnp.max(s, axis=-1, keepdims=True))

    m = jax.lax.fori_loop(0, n_kv, scores,
                          jnp.full((tq, 1), -jnp.inf, dtype=jnp.float32))

    # Phase 2: exponentials (written back in place) + row sum (exact denominator,
    # required before LearnedDropout #1 which needs normalized probabilities).
    def exps(j, l):
        e = jnp.exp(s_buf[j] - m)
        s_buf[j] = e
        return l + jnp.sum(e, axis=-1, keepdims=True)

    l = jax.lax.fori_loop(0, n_kv, exps, jnp.zeros((tq, 1), dtype=jnp.float32))
    if approx_recip:
        inv_l = pl.reciprocal(l, approx=True)        # EUP slot; frees VALU
    else:
        inv_l = 1.0 / l

    # Phase 3: normalize, LearnedDropout #1 cos mask, P @ V (f32 accumulator).
    acc_ref[...] = jnp.zeros_like(acc_ref)

    def pv(j, carry):
        off = pl.multiple_of(j * tk, tk)
        p = s_buf[j] * inv_l                          # (tq, tk) normalized probs, f32
        arg = a1_ref[j] * p + b1_ref[j]
        mask = 0.5 * (jnp.cos(arg.astype(mask_dtype)) + 1.0)
        pm = (p.astype(mask_dtype) * mask).astype(v_ref.dtype)
        acc_ref[...] += jnp.dot(pm, v_ref[pl.ds(off, tk), :],
                                preferred_element_type=jnp.float32)
        return carry

    jax.lax.fori_loop(0, n_kv, pv, 0)
    o_ref[...] = acc_ref[...].astype(o_ref.dtype)


def _attention(arrays, A1, B1, *, n_heads, fused, approx_recip, mask_dtype,
               tq_target=128, tk_target=256):
    if fused:
        (qkv,) = arrays
        B, T, C3 = qkv.shape
        C = C3 // 3
        hs = C // n_heads
        dtype = qkv.dtype
    else:
        q, k, v = arrays
        B, H, T, hs = q.shape
        assert H == n_heads
        C = n_heads * hs
        dtype = q.dtype

    tq = _tile(T, tq_target, 8)
    tk = _tile(T, tk_target, 128)
    nq = T // tq
    n_kv = T // tk
    grid = (B, n_heads, nq)

    kernel = functools.partial(_attn_kernel, tk=tk, approx_recip=approx_recip,
                               mask_dtype=mask_dtype)

    a1 = A1.astype(jnp.float32).reshape(n_kv, 1, tk)
    b1 = B1.astype(jnp.float32).reshape(n_kv, 1, tk)
    ab_spec = pl.BlockSpec((n_kv, 1, tk), lambda b, h, i: (0, 0, 0))

    if fused:
        # Lane-sliced Q/K/V straight out of the (B, T, 3C) projection (hs % 128 == 0).
        in_specs = [
            pl.BlockSpec((None, tq, hs), lambda b, h, i: (b, i, h)),               # Q head h
            pl.BlockSpec((None, T, hs), lambda b, h, i: (b, 0, n_heads + h)),      # K head h
            pl.BlockSpec((None, T, hs), lambda b, h, i: (b, 0, 2 * n_heads + h)),  # V head h
            ab_spec, ab_spec,
        ]
        out_shape = jax.ShapeDtypeStruct((B, T, C), dtype)
        out_specs = pl.BlockSpec((None, tq, hs), lambda b, h, i: (b, i, h))
        args = (qkv, qkv, qkv, a1, b1)
    else:
        in_specs = [
            pl.BlockSpec((None, None, tq, hs), lambda b, h, i: (b, h, i, 0)),
            pl.BlockSpec((None, None, T, hs), lambda b, h, i: (b, h, 0, 0)),
            pl.BlockSpec((None, None, T, hs), lambda b, h, i: (b, h, 0, 0)),
            ab_spec, ab_spec,
        ]
        out_shape = jax.ShapeDtypeStruct((B, n_heads, T, hs), dtype)
        out_specs = pl.BlockSpec((None, None, tq, hs), lambda b, h, i: (b, h, i, 0))
        args = (q, k, v, a1, b1)

    itm = jnp.dtype(dtype).itemsize
    cost = pl.CostEstimate(
        flops=2 * B * n_heads * T * T * hs,       # causal prefix ~ half of 4*T^2*hs
        transcendentals=B * n_heads * T * T,      # exp + cos over the causal prefix
        bytes_accessed=4 * B * T * C * itm,       # Q, K, V read once; O written once
    )
    return pl.pallas_call(
        kernel,
        out_shape=out_shape,
        grid=grid,
        in_specs=in_specs,
        out_specs=out_specs,
        scratch_shapes=[pltpu.VMEM((n_kv, tq, tk), jnp.float32),   # score / prob tiles
                        pltpu.VMEM((tq, hs), jnp.float32)],        # f32 P@V accumulator
        compiler_params=pltpu.CompilerParams(
            dimension_semantics=("parallel", "parallel", "parallel"),
            vmem_limit_bytes=64 * 1024 * 1024),
        cost_estimate=cost,
    )(*args)


# ---------------------------------------------------------------------------
# Full module forward.
# ---------------------------------------------------------------------------

@functools.partial(jax.jit, static_argnames=("n_heads", "compute_dtype"))
def multi_attention_head(x, w_qkv, w_proj, A1, B1, A2, B2, *,
                         n_heads, compute_dtype=jnp.bfloat16):
    B, T, C = x.shape
    hs = C // n_heads
    cdt = compute_dtype

    # Fold 1/sqrt(hs) into the Q columns of W_qkv (removes the (tq, T) score scaling).
    col_scale = jnp.concatenate([jnp.full((C,), hs ** -0.5, jnp.float32),
                                 jnp.ones((2 * C,), jnp.float32)])
    w_qkv_s = (w_qkv.astype(jnp.float32) * col_scale[None, :]).astype(cdt)

    # 1) QKV projection (weight-strip resident matmul; bf16 MXU / f32 accumulation default).
    qkv = _matmul(x.reshape(B * T, C).astype(cdt), w_qkv_s, out_dtype=cdt)   # (B*T, 3C)
    qkv = qkv.reshape(B, T, 3 * C)

    approx = cdt == jnp.bfloat16
    mask_dtype = jnp.bfloat16 if cdt == jnp.bfloat16 else jnp.float32

    # 2) Causal attention + LearnedDropout #1 per (batch, head, q-block).
    if hs % 128 == 0:
        # No head split/merge transposes: Q/K/V are lane-sliced out of qkv and the output is
        # written head-interleaved straight into a (B, T, C) buffer.
        attn = _attention((qkv,), A1, B1, n_heads=n_heads, fused=True,
                          approx_recip=approx, mask_dtype=mask_dtype)
        merged = attn.reshape(B * T, C)
    else:
        # TODO(synk): heads with head_size < 128 would need lane-packing of several heads per
        # block to keep stores lane-dense; fall back to head-major relayout for such configs.
        qkv4 = qkv.reshape(B, T, 3, n_heads, hs)
        q = qkv4[:, :, 0].transpose(0, 2, 1, 3)
        k = qkv4[:, :, 1].transpose(0, 2, 1, 3)
        v = qkv4[:, :, 2].transpose(0, 2, 1, 3)
        attn = _attention((q, k, v), A1, B1, n_heads=n_heads, fused=False,
                          approx_recip=approx, mask_dtype=mask_dtype)
        merged = attn.transpose(0, 2, 1, 3).reshape(B * T, C)

    # 3) Residual projection fused with LearnedDropout #2.
    out = _matmul(merged, w_proj.astype(cdt), A2, B2, out_dtype=x.dtype)
    return out.reshape(B, T, C)


def reference(x, w_qkv, w_proj, A1, B1, A2, B2, *, n_heads, compute_dtype=jnp.float32):
    """Pure-JAX reference mirroring the PyTorch forward (precision-matched casts)."""
    B, T, C = x.shape
    hs = C // n_heads
    cdt = compute_dtype
    f32 = jnp.float32
    hi = jax.lax.Precision.HIGHEST
    qkv = jnp.einsum('btc,cd->btd', x.astype(cdt), w_qkv.astype(cdt),
                     preferred_element_type=f32, precision=hi).astype(cdt)
    q, k, v = jnp.split(qkv, 3, axis=-1)
    q = q.reshape(B, T, n_heads, hs).transpose(0, 2, 1, 3)
    k = k.reshape(B, T, n_heads, hs).transpose(0, 2, 1, 3)
    v = v.reshape(B, T, n_heads, hs).transpose(0, 2, 1, 3)
    attn = jnp.einsum('bhqd,bhkd->bhqk', q, k, preferred_element_type=f32,
                      precision=hi) * hs ** -0.5
    tril = jnp.tril(jnp.ones((T, T), dtype=bool))
    attn = jnp.where(tril[None, None], attn, -jnp.inf)
    attn = jax.nn.softmax(attn, axis=-1)
    attn = attn * (0.5 * jnp.cos(A1 * attn + B1) + 0.5)
    out = jnp.einsum('bhqk,bhkd->bhqd', attn.astype(cdt), v,
                     preferred_element_type=f32, precision=hi).astype(cdt)
    out = out.transpose(0, 2, 1, 3).reshape(B, T, C)
    out = jnp.einsum('btc,cd->btd', out, w_proj.astype(cdt),
                     preferred_element_type=f32, precision=hi)
    out = out * (0.5 * jnp.cos(A2 * out + B2) + 0.5)
    return out.astype(x.dtype)


if __name__ == "__main__":
    def run_case(B, T, C, NH, key):
        kx, kqkv, kproj, ka1, kb1, ka2, kb2 = jax.random.split(key, 7)
        x = jax.random.normal(kx, (B, T, C), dtype=jnp.float32)
        # nn.Linear weights stored transposed to (in, out), bias=False.
        w_qkv = jax.random.normal(kqkv, (C, 3 * C), dtype=jnp.float32) * (1.0 / C ** 0.5)
        w_proj = jax.random.normal(kproj, (C, C), dtype=jnp.float32) * (1.0 / C ** 0.5)
        # LearnedDropout params (moderate synthetic config): A ~ N(2, 0.5), B ~ N(0, 0.02).
        A1 = 2.0 + 0.5 * jax.random.normal(ka1, (T,), dtype=jnp.float32)
        B1 = 0.02 * jax.random.normal(kb1, (T,), dtype=jnp.float32)
        A2 = 2.0 + 0.5 * jax.random.normal(ka2, (C,), dtype=jnp.float32)
        B2 = 0.02 * jax.random.normal(kb2, (C,), dtype=jnp.float32)

        out_f32 = jax.block_until_ready(multi_attention_head(
            x, w_qkv, w_proj, A1, B1, A2, B2, n_heads=NH, compute_dtype=jnp.float32))
        out_bf16 = jax.block_until_ready(multi_attention_head(
            x, w_qkv, w_proj, A1, B1, A2, B2, n_heads=NH, compute_dtype=jnp.bfloat16))

        ref_f32 = reference(x, w_qkv, w_proj, A1, B1, A2, B2, n_heads=NH,
                            compute_dtype=jnp.float32)
        ref_bf16 = reference(x, w_qkv, w_proj, A1, B1, A2, B2, n_heads=NH,
                             compute_dtype=jnp.bfloat16)

        assert out_f32.shape == (B, T, C) and out_bf16.shape == (B, T, C)
        assert bool(jnp.allclose(out_f32, ref_f32, atol=1e-2, rtol=1e-2))
        # bf16 MXU operands + approx reciprocal + bf16 cos mask: precision-matched ref, loose tol.
        assert bool(jnp.allclose(out_bf16, ref_bf16, atol=5e-2, rtol=5e-2))

    key = jax.random.PRNGKey(0)
    k1, k2 = jax.random.split(key)
    # Toy config matching the module spec (context=8, n_embed=32, n_head=4 -> hs=8): fallback path.
    run_case(B=2, T=8, C=32, NH=4, key=k1)
    # hs=128 config exercising the fused lane-sliced path + causal KV-tile skipping.
    run_case(B=2, T=512, C=256, NH=2, key=k2)
    print("KERNEL_OK")
</pallas_src>

<mosaic_0001>
module attributes {stable_mosaic.version = 11 : i64} {
  func.func @_matmul_kernel(%arg0: i32, %arg1: i32, %arg2: memref<16x32xf32, #tpu.memory_space<vmem>>, %arg3: memref<32x96xf32, #tpu.memory_space<vmem>>, %arg4: memref<16x96xf32, #tpu.memory_space<vmem>>) attributes {dimension_semantics = [#tpu.dimension_semantics<parallel>, #tpu.dimension_semantics<parallel>], iteration_bounds = array<i64: 1, 1>, scalar_prefetch = 0 : i64, scratch_operands = 0 : i64, tpu.core_type = #tpu.core_type<tc>, window_params = [{transform_indices = @transform_0, window_bounds = array<i64: 16, 32>}, {transform_indices = @transform_1, window_bounds = array<i64: 32, 96>}, {transform_indices = @transform_2, window_bounds = array<i64: 16, 96>}]} {
    %c0 = arith.constant 0 : index
    %c0_0 = arith.constant 0 : index
    %0 = vector.load %arg2[%c0, %c0_0] : memref<16x32xf32, #tpu.memory_space<vmem>>, vector<16x32xf32>
    %c0_1 = arith.constant 0 : index
    %c0_2 = arith.constant 0 : index
    %1 = vector.load %arg3[%c0_1, %c0_2] : memref<32x96xf32, #tpu.memory_space<vmem>>, vector<32x96xf32>
    %cst = arith.constant dense<0.000000e+00> : vector<16x96xf32>
    %2 = tpu.matmul %0, %1, %cst {dimension_numbers = #tpu.dot_dimension_numbers<[1], [0], [0], [1], [0, 0, 1, 1], [], []>} : vector<16x32xf32>, vector<32x96xf32>, vector<16x96xf32> -> vector<16x96xf32>
    %c0_3 = arith.constant 0 : index
    %c0_4 = arith.constant 0 : index
    %3 = vector.load %arg4[%c0_3, %c0_4] : memref<16x96xf32, #tpu.memory_space<vmem>>, vector<16x96xf32>
    tpu.vector_store %arg4[%c0_3, %c0_4], %2 {strides = array<i32>} : memref<16x96xf32, #tpu.memory_space<vmem>>, vector<16x96xf32>,
    return
  }
  func.func @transform_0(%arg0: i32, %arg1: i32) -> (i32, i32) {
    %c0_i32 = arith.constant 0 : i32
    %c0_i32_0 = arith.constant 0 : i32
    return %arg0, %c0_i32 : i32, i32
  }
  func.func @transform_1(%arg0: i32, %arg1: i32) -> (i32, i32) {
    %c0_i32 = arith.constant 0 : i32
    %c0_i32_0 = arith.constant 0 : i32
    return %c0_i32, %arg1 : i32, i32
  }
  func.func @transform_2(%arg0: i32, %arg1: i32) -> (i32, i32) {
    %c0_i32 = arith.constant 0 : i32
    return %arg0, %arg1 : i32, i32
  }
}

module attributes {stable_mosaic.version = 11 : i64} {
  func.func @_attn_kernel(%arg0: i32, %arg1: i32, %arg2: i32, %arg3: memref<1x1x8x8xf32, #tpu.memory_space<vmem>>, %arg4: memref<1x1x8x8xf32, #tpu.memory_space<vmem>>, %arg5: memref<1x1x8x8xf32, #tpu.memory_space<vmem>>, %arg6: memref<1x1x8xf32, #tpu.memory_space<vmem>>, %arg7: memref<1x1x8xf32, #tpu.memory_space<vmem>>, %arg8: memref<1x1x8x8xf32, #tpu.memory_space<vmem>>, %arg9: memref<1x8x8xf32, #tpu.memory_space<vmem>>, %arg10: memref<8x8xf32, #tpu.memory_space<vmem>>) attributes {dimension_semantics = [#tpu.dimension_semantics<parallel>, #tpu.dimension_semantics<parallel>, #tpu.dimension_semantics<parallel>], iteration_bounds = array<i64: 2, 4, 1>, scalar_prefetch = 0 : i64, scratch_operands = 2 : i64, tpu.core_type = #tpu.core_type<tc>, window_params = [{transform_indices = @transform_0, window_bounds = array<i64: 1, 1, 8, 8>}, {transform_indices = @transform_1, window_bounds = array<i64: 1, 1, 8, 8>}, {transform_indices = @transform_2, window_bounds = array<i64: 1, 1, 8, 8>}, {pipeline_mode = #tpu.pipeline_mode<synchronous>, transform_indices = @transform_3, window_bounds = array<i64: 1, 1, 8>}, {pipeline_mode = #tpu.pipeline_mode<synchronous>, transform_indices = @transform_4, window_bounds = array<i64: 1, 1, 8>}, {transform_indices = @transform_5, window_bounds = array<i64: 1, 1, 8, 8>}]} {
    %c0 = arith.constant 0 : index
    %c0_0 = arith.constant 0 : index
    %c0_1 = arith.constant 0 : index
    %c0_2 = arith.constant 0 : index
    %0 = vector.load %arg3[%c0, %c0_0, %c0_1, %c0_2] : memref<1x1x8x8xf32, #tpu.memory_space<vmem>>, vector<1x1x8x8xf32>
    %1 = vector.shape_cast %0 : vector<1x1x8x8xf32> to vector<8x8xf32>
    %c1_i32 = arith.constant 1 : i32
    %2 = arith.addi %arg2, %c1_i32 : i32
    %c8_i32 = arith.constant 8 : i32
    %3 = arith.muli %2, %c8_i32 : i32
    %c7_i32 = arith.constant 7 : i32
    %4 = arith.addi %3, %c7_i32 : i32
    %c8_i32_3 = arith.constant 8 : i32
    %5 = arith.divsi %4, %c8_i32_3 : i32
    %c8_i32_4 = arith.constant 8 : i32
    %6 = arith.muli %arg2, %c8_i32_4 : i32
    %7 = tpu.iota {dimensions = array<i32: 0>} : vector<8x1xi32>
    %8 = vector.broadcast %6 : i32 to vector<8x1xi32>
    %9 = arith.addi %8, %7 : vector<8x1xi32>
    %cst = arith.constant 0xFF800000 : f32
    %10 = vector.broadcast %cst : f32 to vector<8x1xf32>
    %c0_i32 = arith.constant 0 : i32
    %11 = arith.subi %5, %c0_i32 : i32
    %12 = arith.addi %c0_i32, %11 : i32
    %c1_i32_5 = arith.constant 1 : i32
    %13 = scf.for %arg11 = %c0_i32 to %12 step %c1_i32_5 iter_args(%arg12 = %10) -> (vector<8x1xf32>)  : i32 {
      %c8_i32_22 = arith.constant 8 : i32
      %28 = arith.muli %arg11, %c8_i32_22 : i32
      %29 = tpu.assume_multiple %28, 8 : i32
      %c0_23 = arith.constant 0 : index
      %c0_24 = arith.constant 0 : index
      %30 = arith.index_cast %29 : i32 to index
      %c0_25 = arith.constant 0 : index
      %31 = vector.load %arg4[%c0_23, %c0_24, %30, %c0_25] : memref<1x1x8x8xf32, #tpu.memory_space<vmem>>, vector<1x1x8x8xf32>
      %32 = vector.shape_cast %31 : vector<1x1x8x8xf32> to vector<8x8xf32>
      %cst_26 = arith.constant dense<0.000000e+00> : vector<8x8xf32>
      %33 = tpu.matmul %1, %32, %cst_26 {dimension_numbers = #tpu.dot_dimension_numbers<[1], [1], [0], [0], [0, 0, 1, 0], [], []>} : vector<8x8xf32>, vector<8x8xf32>, vector<8x8xf32> -> vector<8x8xf32>
      %34 = tpu.iota {dimensions = array<i32: 1>} : vector<1x8xi32>
      %35 = vector.broadcast %29 : i32 to vector<1x8xi32>
      %36 = arith.addi %35, %34 : vector<1x8xi32>
      %37 = vector.broadcast %36 : vector<1x8xi32> to vector<8x8xi32>
      %38 = vector.broadcast %9 : vector<8x1xi32> to vector<8x8xi32>
      %39 = arith.cmpi sle, %37, %38 : vector<8x8xi32>
      %cst_27 = arith.constant 0xFF800000 : f32
      %40 = vector.broadcast %cst_27 : f32 to vector<8x8xf32>
      %41 = arith.select %39, %33, %40 : vector<8x8xi1>, vector<8x8xf32>
      %42 = arith.index_cast %arg11 : i32 to index
      %c0_28 = arith.constant 0 : index
      %c0_29 = arith.constant 0 : index
      %43 = vector.load %arg9[%42, %c0_28, %c0_29] : memref<1x8x8xf32, #tpu.memory_space<vmem>>, vector<1x8x8xf32>
      %44 = vector.shape_cast %43 : vector<1x8x8xf32> to vector<8x8xf32>
      %45 = vector.shape_cast %41 : vector<8x8xf32> to vector<1x8x8xf32>
      tpu.vector_store %arg9[%42, %c0_28, %c0_29], %45 {strides = array<i32>} : memref<1x8x8xf32, #tpu.memory_space<vmem>>, vector<1x8x8xf32>,
      %cst_30 = arith.constant dense<0xFF800000> : vector<8xf32>
      %46 = vector.multi_reduction <maximumf>, %41, %cst_30 [1] : vector<8x8xf32> to vector<8xf32>
      %47 = vector.shape_cast %46 : vector<8xf32> to vector<8x1xf32>
      %48 = arith.maximumf %arg12, %47 : vector<8x1xf32>
      scf.yield %48 : vector<8x1xf32>
    }
    %cst_6 = arith.constant 0.000000e+00 : f32
    %14 = vector.broadcast %cst_6 : f32 to vector<8x1xf32>
    %c0_i32_7 = arith.constant 0 : i32
    %15 = arith.subi %5, %c0_i32_7 : i32
    %16 = arith.addi %c0_i32_7, %15 : i32
    %c1_i32_8 = arith.constant 1 : i32
    %17 = scf.for %arg11 = %c0_i32_7 to %16 step %c1_i32_8 iter_args(%arg12 = %14) -> (vector<8x1xf32>)  : i32 {
      %28 = arith.index_cast %arg11 : i32 to index
      %c0_22 = arith.constant 0 : index
      %c0_23 = arith.constant 0 : index
      %29 = vector.load %arg9[%28, %c0_22, %c0_23] : memref<1x8x8xf32, #tpu.memory_space<vmem>>, vector<1x8x8xf32>
      %30 = vector.shape_cast %29 : vector<1x8x8xf32> to vector<8x8xf32>
      %31 = vector.broadcast %13 : vector<8x1xf32> to vector<8x8xf32>
      %32 = arith.subf %30, %31 : vector<8x8xf32>
      %33 = math.exp %32 : vector<8x8xf32>
      %34 = arith.index_cast %arg11 : i32 to index
      %c0_24 = arith.constant 0 : index
      %c0_25 = arith.constant 0 : index
      %35 = vector.load %arg9[%34, %c0_24, %c0_25] : memref<1x8x8xf32, #tpu.memory_space<vmem>>, vector<1x8x8xf32>
      %36 = vector.shape_cast %35 : vector<1x8x8xf32> to vector<8x8xf32>
      %37 = vector.shape_cast %33 : vector<8x8xf32> to vector<1x8x8xf32>
      tpu.vector_store %arg9[%34, %c0_24, %c0_25], %37 {strides = array<i32>} : memref<1x8x8xf32, #tpu.memory_space<vmem>>, vector<1x8x8xf32>,
      %cst_26 = arith.constant dense<0.000000e+00> : vector<8xf32>
      %38 = vector.multi_reduction <add>, %33, %cst_26 [1] : vector<8x8xf32> to vector<8xf32>
      %39 = vector.shape_cast %38 : vector<8xf32> to vector<8x1xf32>
      %40 = arith.addf %arg12, %39 : vector<8x1xf32>
      scf.yield %40 : vector<8x1xf32>
    }
    %cst_9 = arith.constant 1.000000e+00 : f32
    %18 = vector.broadcast %cst_9 : f32 to vector<8x1xf32>
    %19 = arith.divf %18, %17 : vector<8x1xf32>
    %cst_10 = arith.constant 0.000000e+00 : f32
    %20 = vector.broadcast %cst_10 : f32 to vector<8x8xf32>
    %c0_11 = arith.constant 0 : index
    %c0_12 = arith.constant 0 : index
    %21 = vector.load %arg10[%c0_11, %c0_12] : memref<8x8xf32, #tpu.memory_space<vmem>>, vector<8x8xf32>
    tpu.vector_store %arg10[%c0_11, %c0_12], %20 {strides = array<i32>} : memref<8x8xf32, #tpu.memory_space<vmem>>, vector<8x8xf32>,
    %c0_i32_13 = arith.constant 0 : i32
    %c0_i32_14 = arith.constant 0 : i32
    %22 = arith.subi %5, %c0_i32_14 : i32
    %23 = arith.addi %c0_i32_14, %22 : i32
    %c1_i32_15 = arith.constant 1 : i32
    scf.for %arg11 = %c0_i32_14 to %23 step %c1_i32_15  : i32 {
      %c8_i32_22 = arith.constant 8 : i32
      %28 = arith.muli %arg11, %c8_i32_22 : i32
      %29 = tpu.assume_multiple %28, 8 : i32
      %30 = arith.index_cast %arg11 : i32 to index
      %c0_23 = arith.constant 0 : index
      %c0_24 = arith.constant 0 : index
      %31 = vector.load %arg9[%30, %c0_23, %c0_24] : memref<1x8x8xf32, #tpu.memory_space<vmem>>, vector<1x8x8xf32>
      %32 = vector.shape_cast %31 : vector<1x8x8xf32> to vector<8x8xf32>
      %33 = vector.broadcast %19 : vector<8x1xf32> to vector<8x8xf32>
      %34 = arith.mulf %32, %33 : vector<8x8xf32>
      %35 = arith.index_cast %arg11 : i32 to index
      %c0_25 = arith.constant 0 : index
      %c0_26 = arith.constant 0 : index
      %36 = vector.load %arg6[%35, %c0_25, %c0_26] : memref<1x1x8xf32, #tpu.memory_space<vmem>>, vector<1x1x8xf32>
      %37 = vector.shape_cast %36 : vector<1x1x8xf32> to vector<1x8xf32>
      %38 = vector.broadcast %37 : vector<1x8xf32> to vector<8x8xf32>
      %39 = arith.mulf %38, %34 : vector<8x8xf32>
      %40 = arith.index_cast %arg11 : i32 to index
      %c0_27 = arith.constant 0 : index
      %c0_28 = arith.constant 0 : index
      %41 = vector.load %arg7[%40, %c0_27, %c0_28] : memref<1x1x8xf32, #tpu.memory_space<vmem>>, vector<1x1x8xf32>
      %42 = vector.shape_cast %41 : vector<1x1x8xf32> to vector<1x8xf32>
      %43 = vector.broadcast %42 : vector<1x8xf32> to vector<8x8xf32>
      %44 = arith.addf %39, %43 : vector<8x8xf32>
      %45 = math.cos %44 : vector<8x8xf32>
      %cst_29 = arith.constant 1.000000e+00 : f32
      %46 = vector.broadcast %cst_29 : f32 to vector<8x8xf32>
      %47 = arith.addf %45, %46 : vector<8x8xf32>
      %cst_30 = arith.constant 5.000000e-01 : f32
      %48 = vector.broadcast %cst_30 : f32 to vector<8x8xf32>
      %49 = arith.mulf %48, %47 : vector<8x8xf32>
      %50 = arith.mulf %34, %49 : vector<8x8xf32>
      %c0_31 = arith.constant 0 : index
      %c0_32 = arith.constant 0 : index
      %51 = vector.load %arg10[%c0_31, %c0_32] : memref<8x8xf32, #tpu.memory_space<vmem>>, vector<8x8xf32>
      %c0_33 = arith.constant 0 : index
      %c0_34 = arith.constant 0 : index
      %52 = arith.index_cast %29 : i32 to index
      %c0_35 = arith.constant 0 : index
      %53 = vector.load %arg5[%c0_33, %c0_34, %52, %c0_35] : memref<1x1x8x8xf32, #tpu.memory_space<vmem>>, vector<1x1x8x8xf32>
      %54 = vector.shape_cast %53 : vector<1x1x8x8xf32> to vector<8x8xf32>
      %cst_36 = arith.constant dense<0.000000e+00> : vector<8x8xf32>
      %55 = tpu.matmul %50, %54, %cst_36 {dimension_numbers = #tpu.dot_dimension_numbers<[1], [0], [0], [1], [0, 0, 1, 1], [], []>} : vector<8x8xf32>, vector<8x8xf32>, vector<8x8xf32> -> vector<8x8xf32>
      %56 = arith.addf %51, %55 : vector<8x8xf32>
      %c0_37 = arith.constant 0 : index
      %c0_38 = arith.constant 0 : index
      %57 = vector.load %arg10[%c0_37, %c0_38] : memref<8x8xf32, #tpu.memory_space<vmem>>, vector<8x8xf32>
      tpu.vector_store %arg10[%c0_37, %c0_38], %56 {strides = array<i32>} : memref<8x8xf32, #tpu.memory_space<vmem>>, vector<8x8xf32>,
    }
    %c0_16 = arith.constant 0 : index
    %c0_17 = arith.constant 0 : index
    %24 = vector.load %arg10[%c0_16, %c0_17] : memref<8x8xf32, #tpu.memory_space<vmem>>, vector<8x8xf32>
    %c0_18 = arith.constant 0 : index
    %c0_19 = arith.constant 0 : index
    %c0_20 = arith.constant 0 : index
    %c0_21 = arith.constant 0 : index
    %25 = vector.load %arg8[%c0_18, %c0_19, %c0_20, %c0_21] : memref<1x1x8x8xf32, #tpu.memory_space<vmem>>, vector<1x1x8x8xf32>
    %26 = vector.shape_cast %25 : vector<1x1x8x8xf32> to vector<8x8xf32>
    %27 = vector.shape_cast %24 : vector<8x8xf32> to vector<1x1x8x8xf32>
    tpu.vector_store %arg8[%c0_18, %c0_19, %c0_20, %c0_21], %27 {strides = array<i32>} : memref<1x1x8x8xf32, #tpu.memory_space<vmem>>, vector<1x1x8x8xf32>,
    return
  }
  func.func @transform_0(%arg0: i32, %arg1: i32, %arg2: i32) -> (i32, i32, i32, i32) {
    %c0_i32 = arith.constant 0 : i32
    %c0_i32_0 = arith.constant 0 : i32
    return %arg0, %arg1, %arg2, %c0_i32 : i32, i32, i32, i32
  }
  func.func @transform_1(%arg0: i32, %arg1: i32, %arg2: i32) -> (i32, i32, i32, i32) {
    %c0_i32 = arith.constant 0 : i32
    %c0_i32_0 = arith.constant 0 : i32
    %c0_i32_1 = arith.constant 0 : i32
    return %arg0, %arg1, %c0_i32, %c0_i32_0 : i32, i32, i32, i32
  }
  func.func @transform_2(%arg0: i32, %arg1: i32, %arg2: i32) -> (i32, i32, i32, i32) {
    %c0_i32 = arith.constant 0 : i32
    %c0_i32_0 = arith.constant 0 : i32
    %c0_i32_1 = arith.constant 0 : i32
    return %arg0, %arg1, %c0_i32, %c0_i32_0 : i32, i32, i32, i32
  }
  func.func @transform_3(%arg0: i32, %arg1: i32, %arg2: i32) -> (i32, i32, i32) {
    %c0_i32 = arith.constant 0 : i32
    %c0_i32_0 = arith.constant 0 : i32
    %c0_i32_1 = arith.constant 0 : i32
    %c0_i32_2 = arith.constant 0 : i32
    return %c0_i32, %c0_i32_0, %c0_i32_1 : i32, i32, i32
  }
  func.func @transform_4(%arg0: i32, %arg1: i32, %arg2: i32) -> (i32, i32, i32) {
    %c0_i32 = arith.constant 0 : i32
    %c0_i32_0 = arith.constant 0 : i32
    %c0_i32_1 = arith.constant 0 : i32
    %c0_i32_2 = arith.constant 0 : i32
    return %c0_i32, %c0_i32_0, %c0_i32_1 : i32, i32, i32
  }
  func.func @transform_5(%arg0: i32, %arg1: i32, %arg2: i32) -> (i32, i32, i32, i32) {
    %c0_i32 = arith.constant 0 : i32
    %c0_i32_0 = arith.constant 0 : i32
    return %arg0, %arg1, %arg2, %c0_i32 : i32, i32, i32, i32
  }
}

module attributes {stable_mosaic.version = 11 : i64} {
  func.func @_matmul_mask_kernel(%arg0: i32, %arg1: i32, %arg2: memref<16x32xf32, #tpu.memory_space<vmem>>, %arg3: memref<32x32xf32, #tpu.memory_space<vmem>>, %arg4: memref<1x32xf32, #tpu.memory_space<vmem>>, %arg5: memref<1x32xf32, #tpu.memory_space<vmem>>, %arg6: memref<16x32xf32, #tpu.memory_space<vmem>>) attributes {dimension_semantics = [#tpu.dimension_semantics<parallel>, #tpu.dimension_semantics<parallel>], iteration_bounds = array<i64: 1, 1>, scalar_prefetch = 0 : i64, scratch_operands = 0 : i64, tpu.core_type = #tpu.core_type<tc>, window_params = [{transform_indices = @transform_0, window_bounds = array<i64: 16, 32>}, {transform_indices = @transform_1, window_bounds = array<i64: 32, 32>}, {transform_indices = @transform_2, window_bounds = array<i64: 1, 32>}, {transform_indices = @transform_3, window_bounds = array<i64: 1, 32>}, {transform_indices = @transform_4, window_bounds = array<i64: 16, 32>}]} {
    %c0 = arith.constant 0 : index
    %c0_0 = arith.constant 0 : index
    %0 = vector.load %arg2[%c0, %c0_0] : memref<16x32xf32, #tpu.memory_space<vmem>>, vector<16x32xf32>
    %c0_1 = arith.constant 0 : index
    %c0_2 = arith.constant 0 : index
    %1 = vector.load %arg3[%c0_1, %c0_2] : memref<32x32xf32, #tpu.memory_space<vmem>>, vector<32x32xf32>
    %cst = arith.constant dense<0.000000e+00> : vector<16x32xf32>
    %2 = tpu.matmul %0, %1, %cst {dimension_numbers = #tpu.dot_dimension_numbers<[1], [0], [0], [1], [0, 0, 1, 1], [], []>} : vector<16x32xf32>, vector<32x32xf32>, vector<16x32xf32> -> vector<16x32xf32>
    %c0_3 = arith.constant 0 : index
    %c0_4 = arith.constant 0 : index
    %3 = vector.load %arg4[%c0_3, %c0_4] : memref<1x32xf32, #tpu.memory_space<vmem>>, vector<1x32xf32>
    %4 = vector.broadcast %3 : vector<1x32xf32> to vector<16x32xf32>
    %5 = arith.mulf %4, %2 : vector<16x32xf32>
    %c0_5 = arith.constant 0 : index
    %c0_6 = arith.constant 0 : index
    %6 = vector.load %arg5[%c0_5, %c0_6] : memref<1x32xf32, #tpu.memory_space<vmem>>, vector<1x32xf32>
    %7 = vector.broadcast %6 : vector<1x32xf32> to vector<16x32xf32>
    %8 = arith.addf %5, %7 : vector<16x32xf32>
    %9 = math.cos %8 : vector<16x32xf32>
    %cst_7 = arith.constant 1.000000e+00 : f32
    %10 = vector.broadcast %cst_7 : f32 to vector<16x32xf32>
    %11 = arith.addf %9, %10 : vector<16x32xf32>
    %cst_8 = arith.constant 5.000000e-01 : f32
    %12 = vector.broadcast %cst_8 : f32 to vector<16x32xf32>
    %13 = arith.mulf %12, %11 : vector<16x32xf32>
    %14 = arith.mulf %2, %13 : vector<16x32xf32>
    %c0_9 = arith.constant 0 : index
    %c0_10 = arith.constant 0 : index
    %15 = vector.load %arg6[%c0_9, %c0_10] : memref<16x32xf32, #tpu.memory_space<vmem>>, vector<16x32xf32>
    tpu.vector_store %arg6[%c0_9, %c0_10], %14 {strides = array<i32>} : memref<16x32xf32, #tpu.memory_space<vmem>>, vector<16x32xf32>,
    return
  }
  func.func @transform_0(%arg0: i32, %arg1: i32) -> (i32, i32) {
    %c0_i32 = arith.constant 0 : i32
    %c0_i32_0 = arith.constant 0 : i32
    return %arg0, %c0_i32 : i32, i32
  }
  func.func @transform_1(%arg0: i32, %arg1: i32) -> (i32, i32) {
    %c0_i32 = arith.constant 0 : i32
    %c0_i32_0 = arith.constant 0 : i32
    return %c0_i32, %arg1 : i32, i32
  }
  func.func @transform_2(%arg0: i32, %arg1: i32) -> (i32, i32) {
    %c0_i32 = arith.constant 0 : i32
    %c0_i32_0 = arith.constant 0 : i32
    return %c0_i32, %arg1 : i32, i32
  }
  func.func @transform_3(%arg0: i32, %arg1: i32) -> (i32, i32) {
    %c0_i32 = arith.constant 0 : i32
    %c0_i32_0 = arith.constant 0 : i32
    return %c0_i32, %arg1 : i32, i32
  }
  func.func @transform_4(%arg0: i32, %arg1: i32) -> (i32, i32) {
    %c0_i32 = arith.constant 0 : i32
    return %arg0, %arg1 : i32, i32
  }
}

</mosaic_0001>

<llo_original>
// kernel: multi_attention_head.3
$region0: #{multi_attention_head.3}
  #allocation0 [shape = 'u32[]', space=smem, size = 0x4, offset = 0x4, fixed_abs, tag = 'smem constant byte address 0x4 - core index']
  #allocation1 [shape = 'u32[144,128]{1,0:T(1,128)}', space=vmem, size = 0x12000, scoped, tag = 'internal scratch']
  %s0 = inlined_call_operand.hbm [shape: f32[16,32], index: 0, kind: input, shape index: {}]
  %s1 = inlined_call_operand.hbm [shape: f32[32,96], index: 1, kind: input, shape index: {}]
  %s2 = inlined_call_operand.hbm [shape: f32[16,96], index: 2, kind: output, shape index: {}]
  %s3 = sld [smem:[#allocation0]]
  $region26: #{multi_attention_head.3} parent=0
    _
  %s5 = ssub.s32 1, %s3
  %s6 = scalar_select 0, %s5, %s3
  $region1: #{multi_attention_head.3} parent=0
    #allocation2 [shape = 'u8[8192]{0}', space=vmem, size = 0x2000, scoped, tag = 'input window, operand 0, single buffered']
    #allocation3 [shape = 's32[1]{0}', space=sflag, size = 0x4, scoped, tag = 'scoped memory for multi_attention_head.3']
    #allocation4 [shape = 's32[1]{0}', space=sflag, size = 0x4, scoped, tag = 'scoped memory for multi_attention_head.3']
    #allocation5 [shape = 'u8[16384]{0}', space=vmem, size = 0x4000, scoped, tag = 'input window, operand 1, single buffered']
    #allocation6 [shape = 's32[1]{0}', space=sflag, size = 0x4, scoped, tag = 'scoped memory for multi_attention_head.3']
    #allocation7 [shape = 'u8[8192]{0}', space=vmem, size = 0x2000, scoped, tag = 'output window, operand 0, single buffered']
    %7 = vsyncpa [#allocation3], 0
    %8 = vsyncpa [#allocation6], 0
    %9 = vsyncpa [#allocation4], 0
    // Predicated region
    $region2: #{multi_attention_head.3} parent=1 // pred_check
      _
    $region3: #{multi_attention_head.3} parent=1 // pred_check_branch
      %11 = sbr.rel (0) target = $region5
    $region4: #{multi_attention_head.3} parent=1 // pred_region
      %s13 = ssub.s32 256, 256
      %14 = vsyncadd [#allocation3], %s13
      %s15 = sshll.u32 [#allocation2], 4
      %s16 = int_to_ptr.vmem [resolvable:$true] %s15
      %21 = dma.hbm_to_vmem [thread:$0]  %s0, 256, %s16, [#allocation3], 128, 128, 8
    $region5: #{multi_attention_head.3} parent=1 // pred_fallthru
      _
    // Predicated region
    $region6: #{multi_attention_head.3} parent=1 // pred_check
      _
    $region7: #{multi_attention_head.3} parent=1 // pred_check_branch
      %23 = sbr.rel (0) target = $region9
    $region8: #{multi_attention_head.3} parent=1 // pred_region
      %s25 = ssub.s32 512, 512
      %26 = vsyncadd [#allocation6], %s25
      %s27 = sshll.u32 [#allocation5], 4
      %s28 = int_to_ptr.vmem [resolvable:$true] %s27
      %33 = dma.hbm_to_vmem [thread:$0]  %s1, 512, %s28, [#allocation6], 128, 128, 8
    $region9: #{multi_attention_head.3} parent=1 // pred_fallthru
      _
    // Predicated region
    $region10: #{multi_attention_head.3} parent=1 // pred_check
      _
    $region11: #{multi_attention_head.3} parent=1 // pred_check_branch
      %35 = sbr.rel (0) target = $region13
    $region12: #{multi_attention_head.3} parent=1 // pred_region
      %36 = dma.done [#allocation3], 256
    $region13: #{multi_attention_head.3} parent=1 // pred_fallthru
      _
    // Predicated region
    $region14: #{multi_attention_head.3} parent=1 // pred_check
      _
    $region15: #{multi_attention_head.3} parent=1 // pred_check_branch
      %38 = sbr.rel (0) target = $region17
    $region16: #{multi_attention_head.3} parent=1 // pred_region
      %39 = dma.done [#allocation6], 512
    $region17: #{multi_attention_head.3} parent=1 // pred_fallthru
      _
    %v40 = vld [vmem:[#allocation2] sm:$0xff]
    %v41 = vld [vmem:[#allocation2 + $0x8] sm:$0xff]
    %v42 = vld [vmem:[#allocation5] sm:$0xff]
    %v43 = vld [vmem:[#allocation5 + $0x8] sm:$0xff]
    %v44 = vld [vmem:[#allocation5 + $0x10] sm:$0xff]
    %v45 = vld [vmem:[#allocation5 + $0x18] sm:$0xff]
    %vm46 = vcmask 261120
    %v48 = vsel %vm46, %v40, 0
    %v51 = vsel %vm46, %v41, 0
    %53 = vmatprep.subr.mxu0 0.0
    %54 = vmatpush1.msra.mxu0 %v42
    %55 = vmatprep.subr.mxu0 0.0
    %56 = vmatpush1.msra.mxu0 %v43
    %57 = vmatprep.subr.mxu0 0.0
    %58 = vmatpush1.msra.mxu0 %v44
    %59 = vmatprep.subr.mxu0 0.0
    %60 = vmatpush1.msra.mxu0 %v45
    %61 = vmatprep.subr.mxu0 0.0
    %62 = vmatpush1.msra.mxu0 0.0
    %63 = vmatprep.subr.mxu0 0.0
    %64 = vmatpush1.msra.mxu0 0.0
    %65 = vmatprep.subr.mxu0 0.0
    %66 = vmatpush1.msra.mxu0 0.0
    %67 = vmatprep.subr.mxu0 0.0
    %68 = vmatpush1.msra.mxu0 0.0
    %69 = vmatprep.subr.mxu0 0.0
    %70 = vmatpush1.msra.mxu0 0.0
    %71 = vmatprep.subr.mxu0 0.0
    %72 = vmatpush1.msra.mxu0 0.0
    %73 = vmatprep.subr.mxu0 0.0
    %74 = vmatpush1.msra.mxu0 0.0
    %75 = vmatprep.subr.mxu0 0.0
    %76 = vmatpush1.msra.mxu0 0.0
    %77 = vmatprep.subr.mxu0 0.0
    %78 = vmatpush1.msra.mxu0 0.0
    %79 = vmatprep.subr.mxu0 0.0
    %80 = vmatpush1.msra.mxu0 0.0
    %81 = vmatprep.subr.mxu0 0.0
    %82 = vmatpush1.msra.mxu0 0.0
    %83 = vmatprep.subr.mxu0 0.0
    %84 = vmatpush1.msra.mxu0 0.0
    %85 = vmatprep.subr.mxu0 0.0
    %86 = vmatpush1.msra.mxu0 0.0
    %87 = vmatprep.subr.mxu0 0.0
    %88 = vmatpush1.msra.mxu0 0.0
    %89 = vmatprep.subr.mxu0 0.0
    %90 = vmatpush1.msra.mxu0 0.0
    %91 = vmatprep.subr.mxu0 0.0
    %92 = vmatpush1.msra.mxu0 0.0
    %93 = vmatprep.subr.mxu0 0.0
    %94 = vmatpush1.msra.mxu0 0.0
    %95 = vmatprep.subr.mxu0 0.0
    %96 = vmatpush1.msra.mxu0 0.0
    %97 = vmatprep.subr.mxu0 0.0
    %98 = vmatpush1.msra.mxu0 0.0
    %99 = vmatprep.subr.mxu0 0.0
    %100 = vmatpush1.msra.mxu0 0.0
    %101 = vmatprep.subr.mxu0 0.0
    %102 = vmatpush1.msra.mxu0 0.0
    %103 = vmatprep.subr.mxu0 0.0
    %104 = vmatpush1.msra.mxu0 0.0
    %105 = vmatprep.subr.mxu0 0.0
    %106 = vmatpush1.msra.mxu0 0.0
    %107 = vmatprep.subr.mxu0 0.0
    %108 = vmatpush1.msra.mxu0 0.0
    %109 = vmatprep.subr.mxu0 0.0
    %110 = vmatpush1.msra.mxu0 0.0
    %111 = vmatprep.subr.mxu0 0.0
    %112 = vmatpush1.msra.mxu0 0.0
    %113 = vmatprep.subr.mxu0 0.0
    %114 = vmatpush1.msra.mxu0 0.0
    %115 = vmatprep.subr.mxu0 0.0
    %116 = vmatpush1.msra.mxu0 0.0
    %117 = vmatprep.mubr.f32.mxu0 0.0
    %118 = vmatmul.mubr.f32.gmra.mrb[0].mxu0 %v48
    %v119 = vpop.f32.mrb[0].mxu0
    %v120 = vadd.f32 0.0, %v119
    %v121 = vpop.f32.mrb[0].mxu0
    %122 = vmatprep.mubr.f32.mxu0 0.0
    %123 = vmatmul.mubr.f32.gmra.mrb[0].mxu0 %v51
    %v124 = vpop.f32.mrb[0].mxu0
    %v125 = vadd.f32 0.0, %v124
    %v126 = vpop.f32.mrb[0].mxu0
    %127 = vdwg.mxu0
    %vm128 = vcmask 785408
    %129 = vst.msk [vmem:[#allocation7] sm:$0xff] %vm128, %v120
    %130 = vst.msk [vmem:[#allocation7 + $0x8] sm:$0xff] %vm128, %v125
    // Predicated region
    $region18: #{multi_attention_head.3} parent=1 // pred_check
      _
    $region19: #{multi_attention_head.3} parent=1 // pred_check_branch
      %132 = sbr.rel (0) target = $region21
    $region20: #{multi_attention_head.3} parent=1 // pred_region
      %s134 = ssub.s32 256, 256
      %135 = vsyncadd [#allocation4], %s134
      %s136 = sshll.u32 [#allocation7], 4
      %s137 = int_to_ptr.vmem [resolvable:$true] %s136
      %142 = dma.vmem_to_hbm [thread:$0]  %s137, 256, %s2, [#allocation4], 128, 128, 8
    $region21: #{multi_attention_head.3} parent=1 // pred_fallthru
      _
    // Predicated region
    $region22: #{multi_attention_head.3} parent=1 // pred_check
      _
    $region23: #{multi_attention_head.3} parent=1 // pred_check_branch
      %144 = sbr.rel (0) target = $region25
    $region24: #{multi_attention_head.3} parent=1 // pred_region
      %145 = dma.done [#allocation4], 256
    $region25: #{multi_attention_head.3} parent=1 // pred_fallthru
      _
    %146 = vsyncpa [#allocation3], 1
    %147 = vsyncpa [#allocation6], 1
    %148 = vsyncpa [#allocation4], 1

// kernel: multi_attention_head.5
$region0: #{multi_attention_head.5}
  #allocation0 [shape = 'u32[]', space=smem, size = 0x4, offset = 0x4, fixed_abs, tag = 'smem constant byte address 0x4 - core index']
  #allocation1 [shape = 'u32[144,128]{1,0:T(1,128)}', space=vmem, size = 0x12000, scoped, tag = 'internal scratch']
  %s0 = inlined_call_operand.hbm [shape: f32[16,32], index: 0, kind: input, shape index: {}]
  %s1 = inlined_call_operand.hbm [shape: f32[32,32], index: 1, kind: input, shape index: {}]
  %s2 = inlined_call_operand.hbm [shape: f32[1,32], index: 2, kind: input, shape index: {}]
  %s3 = inlined_call_operand.hbm [shape: f32[1,32], index: 3, kind: input, shape index: {}]
  %s4 = inlined_call_operand.hbm [shape: f32[16,32], index: 4, kind: output, shape index: {}]
  %s5 = sld [smem:[#allocation0]]
  $region42: #{multi_attention_head.5} parent=0
    _
  %s7 = ssub.s32 1, %s5
  %s8 = scalar_select 0, %s7, %s5
  $region1: #{multi_attention_head.5} parent=0
    #allocation2 [shape = 'u8[8192]{0}', space=vmem, size = 0x2000, scoped, tag = 'input window, operand 0, single buffered']
    #allocation3 [shape = 's32[1]{0}', space=sflag, size = 0x4, scoped, tag = 'scoped memory for multi_attention_head.5']
    #allocation4 [shape = 's32[1]{0}', space=sflag, size = 0x4, scoped, tag = 'scoped memory for multi_attention_head.5']
    #allocation5 [shape = 'u8[16384]{0}', space=vmem, size = 0x4000, scoped, tag = 'input window, operand 1, single buffered']
    #allocation6 [shape = 's32[1]{0}', space=sflag, size = 0x4, scoped, tag = 'scoped memory for multi_attention_head.5']
    #allocation7 [shape = 'u8[512]{0}', space=vmem, size = 0x400, scoped, tag = 'input window, operand 2, single buffered']
    #allocation8 [shape = 'u8[512]{0}', space=vmem, size = 0x400, scoped, tag = 'input window, operand 3, single buffered']
    #allocation9 [shape = 's32[1]{0}', space=sflag, size = 0x4, scoped, tag = 'scoped memory for multi_attention_head.5']
    #allocation10 [shape = 'u8[8192]{0}', space=vmem, size = 0x2000, scoped, tag = 'output window, operand 0, single buffered']
    %9 = vsyncpa [#allocation3], 0
    %10 = vsyncpa [#allocation6], 0
    %11 = vsyncpa [#allocation9], 0
    %12 = vsyncpa [#allocation4], 0
    // Predicated region
    $region2: #{multi_attention_head.5} parent=1 // pred_check
      _
    $region3: #{multi_attention_head.5} parent=1 // pred_check_branch
      %14 = sbr.rel (0) target = $region5
    $region4: #{multi_attention_head.5} parent=1 // pred_region
      %s16 = ssub.s32 256, 256
      %17 = vsyncadd [#allocation3], %s16
      %s18 = sshll.u32 [#allocation2], 4
      %s19 = int_to_ptr.vmem [resolvable:$true] %s18
      %24 = dma.hbm_to_vmem [thread:$0]  %s0, 256, %s19, [#allocation3], 128, 128, 8
    $region5: #{multi_attention_head.5} parent=1 // pred_fallthru
      _
    // Predicated region
    $region6: #{multi_attention_head.5} parent=1 // pred_check
      _
    $region7: #{multi_attention_head.5} parent=1 // pred_check_branch
      %26 = sbr.rel (0) target = $region9
    $region8: #{multi_attention_head.5} parent=1 // pred_region
      %s28 = ssub.s32 512, 512
      %29 = vsyncadd [#allocation6], %s28
      %s30 = sshll.u32 [#allocation5], 4
      %s31 = int_to_ptr.vmem [resolvable:$true] %s30
      %36 = dma.hbm_to_vmem [thread:$0]  %s1, 512, %s31, [#allocation6], 128, 128, 8
    $region9: #{multi_attention_head.5} parent=1 // pred_fallthru
      _
    // Predicated region
    $region10: #{multi_attention_head.5} parent=1 // pred_check
      _
    $region11: #{multi_attention_head.5} parent=1 // pred_check_branch
      %38 = sbr.rel (0) target = $region13
    $region12: #{multi_attention_head.5} parent=1 // pred_region
      %s40 = ssub.s32 16, 16
      %41 = vsyncadd [#allocation6], %s40
      %s43 = sshll.u32 [#allocation7], 4
      %s44 = int_to_ptr.vmem [resolvable:$true] %s43
      %46 = dma.hbm_to_vmem [thread:$0]  %s2, 16, %s44, [#allocation6]
    $region13: #{multi_attention_head.5} parent=1 // pred_fallthru
      _
    // Predicated region
    $region14: #{multi_attention_head.5} parent=1 // pred_check
      _
    $region15: #{multi_attention_head.5} parent=1 // pred_check_branch
      %48 = sbr.rel (0) target = $region17
    $region16: #{multi_attention_head.5} parent=1 // pred_region
      %s50 = ssub.s32 16, 16
      %51 = vsyncadd [#allocation9], %s50
      %s53 = sshll.u32 [#allocation8], 4
      %s54 = int_to_ptr.vmem [resolvable:$true] %s53
      %56 = dma.hbm_to_vmem [thread:$0]  %s3, 16, %s54, [#allocation9]
    $region17: #{multi_attention_head.5} parent=1 // pred_fallthru
      _
    // Predicated region
    $region18: #{multi_attention_head.5} parent=1 // pred_check
      _
    $region19: #{multi_attention_head.5} parent=1 // pred_check_branch
      %58 = sbr.rel (0) target = $region21
    $region20: #{multi_attention_head.5} parent=1 // pred_region
      %59 = dma.done [#allocation3], 256
    $region21: #{multi_attention_head.5} parent=1 // pred_fallthru
      _
    // Predicated region
    $region22: #{multi_attention_head.5} parent=1 // pred_check
      _
    $region23: #{multi_attention_head.5} parent=1 // pred_check_branch
      %61 = sbr.rel (0) target = $region25
    $region24: #{multi_attention_head.5} parent=1 // pred_region
      %62 = dma.done [#allocation6], 512
    $region25: #{multi_attention_head.5} parent=1 // pred_fallthru
      _
    // Predicated region
    $region26: #{multi_attention_head.5} parent=1 // pred_check
      _
    $region27: #{multi_attention_head.5} parent=1 // pred_check_branch
      %64 = sbr.rel (0) target = $region29
    $region28: #{multi_attention_head.5} parent=1 // pred_region
      %65 = dma.done [#allocation6], 16
    $region29: #{multi_attention_head.5} parent=1 // pred_fallthru
      _
    // Predicated region
    $region30: #{multi_attention_head.5} parent=1 // pred_check
      _
    $region31: #{multi_attention_head.5} parent=1 // pred_check_branch
      %67 = sbr.rel (0) target = $region33
    $region32: #{multi_attention_head.5} parent=1 // pred_region
      %68 = dma.done [#allocation9], 16
    $region33: #{multi_attention_head.5} parent=1 // pred_fallthru
      _
    %v69 = vld [vmem:[#allocation2] sm:$0xff]
    %v70 = vld [vmem:[#allocation2 + $0x8] sm:$0xff]
    %v71 = vld [vmem:[#allocation5] sm:$0xff]
    %v72 = vld [vmem:[#allocation5 + $0x8] sm:$0xff]
    %v73 = vld [vmem:[#allocation5 + $0x10] sm:$0xff]
    %v74 = vld [vmem:[#allocation5 + $0x18] sm:$0xff]
    %vm75 = vcmask 261120
    %v77 = vsel %vm75, %v69, 0
    %v80 = vsel %vm75, %v70, 0
    %82 = vmatprep.subr.mxu0 0.0
    %83 = vmatpush1.msra.mxu0 %v71
    %84 = vmatprep.subr.mxu0 0.0
    %85 = vmatpush1.msra.mxu0 %v72
    %86 = vmatprep.subr.mxu0 0.0
    %87 = vmatpush1.msra.mxu0 %v73
    %88 = vmatprep.subr.mxu0 0.0
    %89 = vmatpush1.msra.mxu0 %v74
    %90 = vmatprep.subr.mxu0 0.0
    %91 = vmatpush1.msra.mxu0 0.0
    %92 = vmatprep.subr.mxu0 0.0
    %93 = vmatpush1.msra.mxu0 0.0
    %94 = vmatprep.subr.mxu0 0.0
    %95 = vmatpush1.msra.mxu0 0.0
    %96 = vmatprep.subr.mxu0 0.0
    %97 = vmatpush1.msra.mxu0 0.0
    %98 = vmatprep.subr.mxu0 0.0
    %99 = vmatpush1.msra.mxu0 0.0
    %100 = vmatprep.subr.mxu0 0.0
    %101 = vmatpush1.msra.mxu0 0.0
    %102 = vmatprep.subr.mxu0 0.0
    %103 = vmatpush1.msra.mxu0 0.0
    %104 = vmatprep.subr.mxu0 0.0
    %105 = vmatpush1.msra.mxu0 0.0
    %106 = vmatprep.subr.mxu0 0.0
    %107 = vmatpush1.msra.mxu0 0.0
    %108 = vmatprep.subr.mxu0 0.0
    %109 = vmatpush1.msra.mxu0 0.0
    %110 = vmatprep.subr.mxu0 0.0
    %111 = vmatpush1.msra.mxu0 0.0
    %112 = vmatprep.subr.mxu0 0.0
    %113 = vmatpush1.msra.mxu0 0.0
    %114 = vmatprep.subr.mxu0 0.0
    %115 = vmatpush1.msra.mxu0 0.0
    %116 = vmatprep.subr.mxu0 0.0
    %117 = vmatpush1.msra.mxu0 0.0
    %118 = vmatprep.subr.mxu0 0.0
    %119 = vmatpush1.msra.mxu0 0.0
    %120 = vmatprep.subr.mxu0 0.0
    %121 = vmatpush1.msra.mxu0 0.0
    %122 = vmatprep.subr.mxu0 0.0
    %123 = vmatpush1.msra.mxu0 0.0
    %124 = vmatprep.subr.mxu0 0.0
    %125 = vmatpush1.msra.mxu0 0.0
    %126 = vmatprep.subr.mxu0 0.0
    %127 = vmatpush1.msra.mxu0 0.0
    %128 = vmatprep.subr.mxu0 0.0
    %129 = vmatpush1.msra.mxu0 0.0
    %130 = vmatprep.subr.mxu0 0.0
    %131 = vmatpush1.msra.mxu0 0.0
    %132 = vmatprep.subr.mxu0 0.0
    %133 = vmatpush1.msra.mxu0 0.0
    %134 = vmatprep.subr.mxu0 0.0
    %135 = vmatpush1.msra.mxu0 0.0
    %136 = vmatprep.subr.mxu0 0.0
    %137 = vmatpush1.msra.mxu0 0.0
    %138 = vmatprep.subr.mxu0 0.0
    %139 = vmatpush1.msra.mxu0 0.0
    %140 = vmatprep.subr.mxu0 0.0
    %141 = vmatpush1.msra.mxu0 0.0
    %142 = vmatprep.subr.mxu0 0.0
    %143 = vmatpush1.msra.mxu0 0.0
    %144 = vmatprep.subr.mxu0 0.0
    %145 = vmatpush1.msra.mxu0 0.0
    %146 = vmatprep.mubr.f32.mxu0 0.0
    %147 = vmatmul.mubr.f32.gmra.mrb[0].mxu0 %v77
    %v148 = vpop.f32.mrb[0].mxu0
    %v149 = vadd.f32 0.0, %v148
    %v150 = vpop.f32.mrb[0].mxu0
    %151 = vmatprep.mubr.f32.mxu0 0.0
    %152 = vmatmul.mubr.f32.gmra.mrb[0].mxu0 %v80
    %v153 = vpop.f32.mrb[0].mxu0
    %v154 = vadd.f32 0.0, %v153
    %v155 = vpop.f32.mrb[0].mxu0
    %156 = vdwg.mxu0
    %v157 = vld [vmem:[#allocation7] sm:$0x1]
    %v159 = vlaneseq
    %v160 = vshrl.u32 %v159, 7
    %v161 = vsub.s32 0, %v160
    %v162 = vrot.slane %v157, %v161
    %v164 = vmul.f32 %v162, %v149
    %v165 = vmul.f32 %v162, %v154
    %v166 = vld [vmem:[#allocation8] sm:$0x1]
    %v168 = vlaneseq
    %v169 = vshrl.u32 %v168, 7
    %v170 = vsub.s32 0, %v169
    %v171 = vrot.slane %v166, %v170
    %v173 = vadd.f32 %v164, %v171
    %v174 = vadd.f32 %v165, %v171
    %v175 = vand.u32 2147483647, %v173
    %vm176 = vcmp.le.f32.partialorder %v175, 0.7853982
    %vm177 = vcmp.lt.s32.totalorder %v173, 0
    %v178 = vand.u32 %v173, 2139095040
    %v179 = vshrl.u32 %v178, 23
    %v180 = vsub.s32 %v179, 127
    %v181 = vand.u32 2147483647, %v173
    %v182 = vand.u32 %v181, 8388607
    %v183 = vor.u32 %v182, 8388608
    %v184 = vsub.s32 0, %v183
    %v185 = vadd.s32 %v180, 1
    %vm186 = vcmp.gt.s32.totalorder %v185, 0
    %v187 = vsel %vm186, %v185, 0
    %v188 = vshrl.u32 %v187, 5
    %v189 = vand.u32 %v187, 31
    %v190 = vsub.s32 32, %v189
    %v191 = vshrl.u32 683565275, %v190
    %v192 = vshll.u32 683565275, %v189
    %v193 = vshrl.u32 2475754826, %v190
    %v194 = vor.u32 %v192, %v193
    %v195 = vshll.u32 2475754826, %v189
    %v196 = vshrl.u32 2131351028, %v190
    %v197 = vor.u32 %v195, %v196
    %v198 = vshll.u32 2131351028, %v189
    %v199 = vshrl.u32 2102212464, %v190
    %v200 = vor.u32 %v198, %v199
    %v201 = vshll.u32 2102212464, %v189
    %v202 = vshrl.u32 920167782, %v190
    %v203 = vor.u32 %v201, %v202
    %v204 = vshll.u32 920167782, %v189
    %v205 = vshrl.u32 1326507024, %v190
    %v206 = vor.u32 %v204, %v205
    %vm207 = vcmp.lt.s32.totalorder %v188, 1
    %vm208 = vcmp.lt.s32.totalorder %v188, 2
    %vm209 = vcmp.lt.s32.totalorder %v188, 3
    %vm210 = vcmp.lt.s32.totalorder %v188, 4
    %v211 = vsel %vm207, %v191, %v194
    %v212 = vsel %vm210, %v200, 2102212464
    %v213 = vsel %vm209, %v197, %v212
    %v214 = vsel %vm208, %v211, %v213
    %v215 = vsel %vm207, %v194, %v197
    %v216 = vsel %vm210, %v203, 920167782
    %v217 = vsel %vm209, %v200, %v216
    %v218 = vsel %vm208, %v215, %v217
    %v219 = vsel %vm207, %v197, %v200
    %v220 = vsel %vm210, %v206, 1326507024
    %v221 = vsel %vm209, %v203, %v220
    %v222 = vsel %vm208, %v219, %v221
    %v223 = vshll.u32 %v183, 8
    %v224 = vmul.u32.u64.compose %v223, %v222
    %v225 = vextract.low.u32 %v224
    %v226 = vextract.high.u32 %v224
    %v227 = vmul.u32.u64.compose %v223, %v218
    %v228 = vextract.low.u32 %v227
    %v229 = vextract.high.u32 %v227
    %v230 = vmul.u32 %v223, %v214
    %v231 = vadd.s32 %v226, %v228
    %vm232 = vc.u32 %v226, %v228
    %v233 = vadd.s32 %v229, 1
    %v234 = vsel %vm232, %v233, %v229
    %v235 = vadd.s32 %v230, %v234
    %v236 = vadd.s32 %v235, 536870912
    %v237 = vshrl.u32 %v236, 30
    %v238 = vshll.u32 %v237, 30
    %v239 = vsub.s32 %v235, %v238
    %vm240 = vcmp.lt.s32.totalorder %v239, 0
    %v241 = vsub.s32 0, %v239
    %v242 = vsel %vm240, %v241, %v239
    %v243 = vclz %v242
    %v244 = vsub.s32 %v243, 2
    %vm245 = vcmp.gt.s32.totalorder 0, %v244
    %v246 = vsel %vm245, 0, %v244
    %v247 = vsub.s32 32, %v246
    %v248 = vshll.u32 %v239, %v246
    %v249 = vshrl.u32 %v231, %v247
    %v250 = vor.u32 %v248, %v249
    %v251 = vsub.s32 4294967266, %v246
    %v252 = vadd.s32 %v251, 127
    %v253 = vshll.u32 %v252, 23
    %v254 = vor.u32 4788187, %v253
    %v255 = vand.u32 2147483647, %v254
    %v257 = vcvt.s32.f32 %v250
    %v258 = vmul.f32 %v257, %v255
    %v259 = vxor.u32 %v258, 2147483648
    %v260 = vsel %vm177, %v259, %v258
    %v261 = vsub.s32 4, %v237
    %v262 = vsel %vm177, %v261, %v237
    %v263 = vsel %vm176, %v173, %v260
    %v264 = vsel %vm176, 0, %v262
    %v265 = vcosq.f32.pop %v263
    %v266 = vsinq.f32.pop %v263
    %vm267 = vweird.f32 %v173
    %v268 = vand.u32 %v264, 3
    %vm269 = vcmp.lt.s32.totalorder %v268, 2
    %vm270 = vcmp.eq.s32.totalorder %v268, 0
    %v271 = vxor.u32 %v266, 2147483648
    %v272 = vsel %vm270, %v265, %v271
    %vm273 = vcmp.eq.s32.totalorder %v268, 2
    %v274 = vxor.u32 %v265, 2147483648
    %v275 = vsel %vm273, %v274, %v266
    %v276 = vsel %vm269, %v272, %v275
    %v277 = vsel %vm267, nan, %v276
    %v278 = vand.u32 2147483647, %v174
    %vm279 = vcmp.le.f32.partialorder %v278, 0.7853982
    %vm280 = vcmp.lt.s32.totalorder %v174, 0
    %v281 = vand.u32 %v174, 2139095040
    %v282 = vshrl.u32 %v281, 23
    %v283 = vsub.s32 %v282, 127
    %v284 = vand.u32 2147483647, %v174
    %v285 = vand.u32 %v284, 8388607
    %v286 = vor.u32 %v285, 8388608
    %v287 = vsub.s32 0, %v286
    %v288 = vadd.s32 %v283, 1
    %vm289 = vcmp.gt.s32.totalorder %v288, 0
    %v290 = vsel %vm289, %v288, 0
    %v291 = vshrl.u32 %v290, 5
    %v292 = vand.u32 %v290, 31
    %v293 = vsub.s32 32, %v292
    %v294 = vshrl.u32 683565275, %v293
    %v295 = vshll.u32 683565275, %v292
    %v296 = vshrl.u32 2475754826, %v293
    %v297 = vor.u32 %v295, %v296
    %v298 = vshll.u32 2475754826, %v292
    %v299 = vshrl.u32 2131351028, %v293
    %v300 = vor.u32 %v298, %v299
    %v301 = vshll.u32 2131351028, %v292
    %v302 = vshrl.u32 2102212464, %v293
    %v303 = vor.u32 %v301, %v302
    %v304 = vshll.u32 2102212464, %v292
    %v305 = vshrl.u32 920167782, %v293
    %v306 = vor.u32 %v304, %v305
    %v307 = vshll.u32 920167782, %v292
    %v308 = vshrl.u32 1326507024, %v293
    %v309 = vor.u32 %v307, %v308
    %vm310 = vcmp.lt.s32.totalorder %v291, 1
    %vm311 = vcmp.lt.s32.totalorder %v291, 2
    %vm312 = vcmp.lt.s32.totalorder %v291, 3
    %vm313 = vcmp.lt.s32.totalorder %v291, 4
    %v314 = vsel %vm310, %v294, %v297
    %v315 = vsel %vm313, %v303, 2102212464
    %v316 = vsel %vm312, %v300, %v315
    %v317 = vsel %vm311, %v314, %v316
    %v318 = vsel %vm310, %v297, %v300
    %v319 = vsel %vm313, %v306, 920167782
    %v320 = vsel %vm312, %v303, %v319
    %v321 = vsel %vm311, %v318, %v320
    %v322 = vsel %vm310, %v300, %v303
    %v323 = vsel %vm313, %v309, 1326507024
    %v324 = vsel %vm312, %v306, %v323
    %v325 = vsel %vm311, %v322, %v324
    %v326 = vshll.u32 %v286, 8
    %v327 = vmul.u32.u64.compose %v326, %v325
    %v328 = vextract.low.u32 %v327
    %v329 = vextract.high.u32 %v327
    %v330 = vmul.u32.u64.compose %v326, %v321
    %v331 = vextract.low.u32 %v330
    %v332 = vextract.high.u32 %v330
    %v333 = vmul.u32 %v326, %v317
    %v334 = vadd.s32 %v329, %v331
    %vm335 = vc.u32 %v329, %v331
    %v336 = vadd.s32 %v332, 1
    %v337 = vsel %vm335, %v336, %v332
    %v338 = vadd.s32 %v333, %v337
    %v339 = vadd.s32 %v338, 536870912
    %v340 = vshrl.u32 %v339, 30
    %v341 = vshll.u32 %v340, 30
    %v342 = vsub.s32 %v338, %v341
    %vm343 = vcmp.lt.s32.totalorder %v342, 0
    %v344 = vsub.s32 0, %v342
    %v345 = vsel %vm343, %v344, %v342
    %v346 = vclz %v345
    %v347 = vsub.s32 %v346, 2
    %vm348 = vcmp.gt.s32.totalorder 0, %v347
    %v349 = vsel %vm348, 0, %v347
    %v350 = vsub.s32 32, %v349
    %v351 = vshll.u32 %v342, %v349
    %v352 = vshrl.u32 %v334, %v350
    %v353 = vor.u32 %v351, %v352
    %v354 = vsub.s32 4294967266, %v349
    %v355 = vadd.s32 %v354, 127
    %v356 = vshll.u32 %v355, 23
    %v357 = vor.u32 4788187, %v356
    %v358 = vand.u32 2147483647, %v357
    %v360 = vcvt.s32.f32 %v353
    %v361 = vmul.f32 %v360, %v358
    %v362 = vxor.u32 %v361, 2147483648
    %v363 = vsel %vm280, %v362, %v361
    %v364 = vsub.s32 4, %v340
    %v365 = vsel %vm280, %v364, %v340
    %v366 = vsel %vm279, %v174, %v363
    %v367 = vsel %vm279, 0, %v365
    %v368 = vcosq.f32.pop %v366
    %v369 = vsinq.f32.pop %v366
    %vm370 = vweird.f32 %v174
    %v371 = vand.u32 %v367, 3
    %vm372 = vcmp.lt.s32.totalorder %v371, 2
    %vm373 = vcmp.eq.s32.totalorder %v371, 0
    %v374 = vxor.u32 %v369, 2147483648
    %v375 = vsel %vm373, %v368, %v374
    %vm376 = vcmp.eq.s32.totalorder %v371, 2
    %v377 = vxor.u32 %v368, 2147483648
    %v378 = vsel %vm376, %v377, %v369
    %v379 = vsel %vm372, %v375, %v378
    %v380 = vsel %vm370, nan, %v379
    %v381 = vadd.f32 %v277, 1.0
    %v382 = vadd.f32 %v380, 1.0
    %v383 = vmul.f32 %v381, 0.5
    %v384 = vmul.f32 %v382, 0.5
    %v385 = vmul.f32 %v149, %v383
    %v386 = vmul.f32 %v154, %v384
    %387 = vst.msk [vmem:[#allocation10] sm:$0xff] %vm75, %v385
    %388 = vst.msk [vmem:[#allocation10 + $0x8] sm:$0xff] %vm75, %v386
    // Predicated region
    $region34: #{multi_attention_head.5} parent=1 // pred_check
      _
    $region35: #{multi_attention_head.5} parent=1 // pred_check_branch
      %390 = sbr.rel (0) target = $region37
    $region36: #{multi_attention_head.5} parent=1 // pred_region
      %s392 = ssub.s32 256, 256
      %393 = vsyncadd [#allocation4], %s392
      %s394 = sshll.u32 [#allocation10], 4
      %s395 = int_to_ptr.vmem [resolvable:$true] %s394
      %400 = dma.vmem_to_hbm [thread:$0]  %s395, 256, %s4, [#allocation4], 128, 128, 8
    $region37: #{multi_attention_head.5} parent=1 // pred_fallthru
      _
    // Predicated region
    $region38: #{multi_attention_head.5} parent=1 // pred_check
      _
    $region39: #{multi_attention_head.5} parent=1 // pred_check_branch
      %402 = sbr.rel (0) target = $region41
    $region40: #{multi_attention_head.5} parent=1 // pred_region
      %403 = dma.done [#allocation4], 256
    $region41: #{multi_attention_head.5} parent=1 // pred_fallthru
      _
    %404 = vsyncpa [#allocation3], 1
    %405 = vsyncpa [#allocation6], 1
    %406 = vsyncpa [#allocation9], 1
    %407 = vsyncpa [#allocation4], 1

// kernel: multi_attention_head.4
$region0: #{multi_attention_head.4}
  #allocation0 [shape = 'u32[]', space=smem, size = 0x4, offset = 0x4, fixed_abs, tag = 'smem constant byte address 0x4 - core index']
  #allocation1 [shape = 'u32[144,128]{1,0:T(1,128)}', space=vmem, size = 0x12000, scoped, tag = 'internal scratch']
  #allocation2 [shape = 'f32[1,8,8]{2,1,0:T(8,128)}', space=vmem, size = 0x1000, scoped, tag = 'scratch operand']
  #allocation3 [shape = 'f32[8,8]{1,0:T(8,128)}', space=vmem, size = 0x1000, scoped, tag = 'scratch operand']
  %s0 = inlined_call_operand.hbm [shape: f32[2,4,8,8], index: 0, kind: input, shape index: {}]
  %s1 = inlined_call_operand.hbm [shape: f32[2,4,8,8], index: 1, kind: input, shape index: {}]
  %s2 = inlined_call_operand.hbm [shape: f32[2,4,8,8], index: 2, kind: input, shape index: {}]
  %s3 = inlined_call_operand.hbm [shape: f32[1,1,8], index: 3, kind: input, shape index: {}]
  %s4 = inlined_call_operand.hbm [shape: f32[1,1,8], index: 4, kind: input, shape index: {}]
  %s5 = inlined_call_operand.hbm [shape: f32[2,4,8,8], index: 5, kind: output, shape index: {}]
  %s6 = sld [smem:[#allocation0]]
  $region94: #{multi_attention_head.4} parent=0
    _
  %s8 = ssub.s32 1, %s6
  %s9 = scalar_select 0, %s8, %s6
  $region1: #{multi_attention_head.4} parent=0
    #allocation4 [shape = 'u8[8192]{0}', space=vmem, size = 0x2000, scoped, tag = 'input window, operand 0']
    #allocation5 [shape = 's32[2]{0}', space=sflag, size = 0x8, scoped, tag = 'scoped memory for multi_attention_head.4']
    #allocation6 [shape = 's32[2]{0}', space=sflag, size = 0x8, scoped, tag = 'scoped memory for multi_attention_head.4']
    #allocation7 [shape = 'u8[8192]{0}', space=vmem, size = 0x2000, scoped, tag = 'input window, operand 1']
    #allocation8 [shape = 's32[2]{0}', space=sflag, size = 0x8, scoped, tag = 'scoped memory for multi_attention_head.4']
    #allocation9 [shape = 'u8[8192]{0}', space=vmem, size = 0x2000, scoped, tag = 'input window, operand 2']
    #allocation10 [shape = 'u8[512]{0}', space=vmem, size = 0x400, scoped, tag = 'input window, operand 3, single buffered']
    #allocation11 [shape = 's32[1]{0}', space=sflag, size = 0x4, scoped, tag = 'scoped memory for multi_attention_head.4']
    #allocation12 [shape = 'u8[512]{0}', space=vmem, size = 0x400, scoped, tag = 'input window, operand 4, single buffered']
    #allocation13 [shape = 'u8[8192]{0}', space=vmem, size = 0x2000, scoped, tag = 'output window, operand 0']
    %10 = vsyncpa [#allocation5], 0
    %s11 = scalar_lea.sflag [#allocation5], 1
    %12 = vsyncpa %s11, 0
    %13 = vsyncpa [#allocation8], 0
    %s14 = scalar_lea.sflag [#allocation8], 1
    %15 = vsyncpa %s14, 0
    %16 = vsyncpa [#allocation11], 0
    %17 = vsyncpa [#allocation6], 0
    %s18 = scalar_lea.sflag [#allocation6], 1
    %19 = vsyncpa %s18, 0
    loop: start=0, step=1, limit=10
    $region2: #{multi_attention_head.4} parent=1 // loop_pre_header
      _
    $region3: #{multi_attention_head.4} parent=1 // loop_header
      %s21 = sphi 0, %s25
      %p22 = scmp.ge.s32.totalorder %s21, 10
      %s28 = sphi 0, %s47
      %s29 = sphi 0, %s43
      %s30 = sphi 0, %s39
      %s31 = sphi 0, %s28
      %s32 = sphi 0, %s29
      %s33 = sphi 0, %s30
      %s34 = sphi 0, %s31
      %s35 = sphi 0, %s32
      %s36 = sphi 0, %s33
      %s54 = sphi 0, %s56
      %s57 = sphi 0, %s54
      %s58 = sphi 0, %s57
      %s74 = sphi 0, %s58
      %s82 = sphi 0, %s84
      %s85 = sphi 0, %s82
      %s86 = sphi 0, %s85
      %s102 = sphi 0, %s86
      %s110 = sphi 0, %s112
      %s113 = sphi 0, %s110
      %s114 = sphi 0, %s113
      %s130 = sphi 0, %s114
      %s134 = sphi 0, %s134
      %s136 = sphi 0, %s134
      %s137 = sphi 0, %s136
      %s151 = sphi 0, %s137
      %s155 = sphi 0, %s155
      %s157 = sphi 0, %s155
      %s158 = sphi 0, %s157
      %s172 = sphi 0, %s158
      %s182 = sphi 0, %s184
      %s185 = sphi 0, %s182
      %s186 = sphi 0, %s185
      %s202 = sphi 0, %s186
    $region4: #{multi_attention_head.4} parent=1 // loop_header_branch
      %24 = sbr.rel (%p22) target = $region8
    $region5: #{multi_attention_head.4} parent=1 // loop_body
      %s26 = ssub.s32 %s21, 1
      %s27 = ssub.s32 %s21, 2
      %s37 = sadd.s32 1, %s30
      %p38 = scmp.ge.s32.totalorder %s37, 1
      %s39 = scalar_select %p38, 0, %s37
      %s40 = sadd.s32 1, %s29
      %s41 = scalar_select %p38, %s40, %s29
      %p42 = scmp.ge.s32.totalorder %s41, 4
      %s43 = scalar_select %p42, 0, %s41
      %s44 = sadd.s32 1, %s28
      %s45 = scalar_select %p42, %s44, %s28
      %p46 = scmp.ge.s32.totalorder %s45, 2
      %s47 = scalar_select %p46, 0, %s45
      %s48 = ssub.s32 %s28, %s47
      %s49 = ssub.s32 %s29, %s43
      %s50 = sor.u32 %s48, %s49
      %s51 = ssub.s32 %s30, %s39
      %s52 = sor.u32 %s50, %s51
      %p53 = scmp.eq.s32.totalorder %s52, 0
      %s55 = sadd.s32 %s54, 1
      %s56 = scalar_select %p53, %s54, %s55
      %p59 = pneg %p53
      %p60 = scmp.eq.s32.totalorder %s21, 7
      %p61 = por %p59, %p60
      %p62 = scmp.ne.s32.totalorder %s54, %s57
      %p63 = scmp.eq.s32.totalorder %s21, 0
      %p64 = por %p62, %p63
      %p65 = scmp.ne.s32.totalorder %s54, %s57
      %p66 = scmp.eq.s32.totalorder %s26, 7
      %p67 = por %p65, %p66
      %p68 = scmp.ne.s32.totalorder %s57, %s58
      %p69 = scmp.eq.s32.totalorder %s26, 0
      %p70 = por %p68, %p69
      %p71 = scmp.ne.s32.totalorder %s57, %s58
      %p72 = scmp.eq.s32.totalorder %s27, 7
      %p73 = por %p71, %p72
      %p75 = scmp.ne.s32.totalorder %s58, %s74
      %p76 = scmp.eq.s32.totalorder %s27, 0
      %p77 = por %p75, %p76
      %s78 = ssub.s32 %s28, %s47
      %s79 = ssub.s32 %s29, %s43
      %s80 = sor.u32 %s78, %s79
      %p81 = scmp.eq.s32.totalorder %s80, 0
      %s83 = sadd.s32 %s82, 1
      %s84 = scalar_select %p81, %s82, %s83
      %p87 = pneg %p81
      %p88 = scmp.eq.s32.totalorder %s21, 7
      %p89 = por %p87, %p88
      %p90 = scmp.ne.s32.totalorder %s82, %s85
      %p91 = scmp.eq.s32.totalorder %s21, 0
      %p92 = por %p90, %p91
      %p93 = scmp.ne.s32.totalorder %s82, %s85
      %p94 = scmp.eq.s32.totalorder %s26, 7
      %p95 = por %p93, %p94
      %p96 = scmp.ne.s32.totalorder %s85, %s86
      %p97 = scmp.eq.s32.totalorder %s26, 0
      %p98 = por %p96, %p97
      %p99 = scmp.ne.s32.totalorder %s85, %s86
      %p100 = scmp.eq.s32.totalorder %s27, 7
      %p101 = por %p99, %p100
      %p103 = scmp.ne.s32.totalorder %s86, %s102
      %p104 = scmp.eq.s32.totalorder %s27, 0
      %p105 = por %p103, %p104
      %s106 = ssub.s32 %s28, %s47
      %s107 = ssub.s32 %s29, %s43
      %s108 = sor.u32 %s106, %s107
      %p109 = scmp.eq.s32.totalorder %s108, 0
      %s111 = sadd.s32 %s110, 1
      %s112 = scalar_select %p109, %s110, %s111
      %p115 = pneg %p109
      %p116 = scmp.eq.s32.totalorder %s21, 7
      %p117 = por %p115, %p116
      %p118 = scmp.ne.s32.totalorder %s110, %s113
      %p119 = scmp.eq.s32.totalorder %s21, 0
      %p120 = por %p118, %p119
      %p121 = scmp.ne.s32.totalorder %s110, %s113
      %p122 = scmp.eq.s32.totalorder %s26, 7
      %p123 = por %p121, %p122
      %p124 = scmp.ne.s32.totalorder %s113, %s114
      %p125 = scmp.eq.s32.totalorder %s26, 0
      %p126 = por %p124, %p125
      %p127 = scmp.ne.s32.totalorder %s113, %s114
      %p128 = scmp.eq.s32.totalorder %s27, 7
      %p129 = por %p127, %p128
      %p131 = scmp.ne.s32.totalorder %s114, %s130
      %p132 = scmp.eq.s32.totalorder %s27, 0
      %p133 = por %p131, %p132
      %s135 = sadd.s32 %s134, 1
      %p138 = scmp.eq.s32.totalorder %s21, 7
      %p139 = scmp.ne.s32.totalorder %s134, %s136
      %p140 = scmp.eq.s32.totalorder %s21, 0
      %p141 = por %p139, %p140
      %p142 = scmp.ne.s32.totalorder %s134, %s136
      %p143 = scmp.eq.s32.totalorder %s26, 7
      %p144 = por %p142, %p143
      %p145 = scmp.ne.s32.totalorder %s136, %s137
      %p146 = scmp.eq.s32.totalorder %s26, 0
      %p147 = por %p145, %p146
      %p148 = scmp.ne.s32.totalorder %s136, %s137
      %p149 = scmp.eq.s32.totalorder %s27, 7
      %p150 = por %p148, %p149
      %p152 = scmp.ne.s32.totalorder %s137, %s151
      %p153 = scmp.eq.s32.totalorder %s27, 0
      %p154 = por %p152, %p153
      %s156 = sadd.s32 %s155, 1
      %p159 = scmp.eq.s32.totalorder %s21, 7
      %p160 = scmp.ne.s32.totalorder %s155, %s157
      %p161 = scmp.eq.s32.totalorder %s21, 0
      %p162 = por %p160, %p161
      %p163 = scmp.ne.s32.totalorder %s155, %s157
      %p164 = scmp.eq.s32.totalorder %s26, 7
      %p165 = por %p163, %p164
      %p166 = scmp.ne.s32.totalorder %s157, %s158
      %p167 = scmp.eq.s32.totalorder %s26, 0
      %p168 = por %p166, %p167
      %p169 = scmp.ne.s32.totalorder %s157, %s158
      %p170 = scmp.eq.s32.totalorder %s27, 7
      %p171 = por %p169, %p170
      %p173 = scmp.ne.s32.totalorder %s158, %s172
      %p174 = scmp.eq.s32.totalorder %s27, 0
      %p175 = por %p173, %p174
      %s176 = ssub.s32 %s28, %s47
      %s177 = ssub.s32 %s29, %s43
      %s178 = sor.u32 %s176, %s177
      %s179 = ssub.s32 %s30, %s39
      %s180 = sor.u32 %s178, %s179
      %p181 = scmp.eq.s32.totalorder %s180, 0
      %s183 = sadd.s32 %s182, 1
      %s184 = scalar_select %p181, %s182, %s183
      %p187 = pneg %p181
      %p188 = scmp.eq.s32.totalorder %s21, 7
      %p189 = por %p187, %p188
      %p190 = scmp.ne.s32.totalorder %s182, %s185
      %p191 = scmp.eq.s32.totalorder %s21, 0
      %p192 = por %p190, %p191
      %p193 = scmp.ne.s32.totalorder %s182, %s185
      %p194 = scmp.eq.s32.totalorder %s26, 7
      %p195 = por %p193, %p194
      %p196 = scmp.ne.s32.totalorder %s185, %s186
      %p197 = scmp.eq.s32.totalorder %s26, 0
      %p198 = por %p196, %p197
      %p199 = scmp.ne.s32.totalorder %s185, %s186
      %p200 = scmp.eq.s32.totalorder %s27, 7
      %p201 = por %p199, %p200
      %p203 = scmp.ne.s32.totalorder %s186, %s202
      %p204 = scmp.eq.s32.totalorder %s27, 0
      %p205 = por %p203, %p204
      %p206 = scmp.le.s32.totalorder 1, %s21
      %p207 = scmp.lt.s32.totalorder %s21, 9
      %p208 = pnand %p206, %p207
      %p209 = pneg %p208
      // Predicated region
      $region9: #{multi_attention_head.4} parent=5 // pred_check
        _
      $region10: #{multi_attention_head.4} parent=5 // pred_check_branch
        %211 = sbr.rel (%p208) target = $region12
      $region11: #{multi_attention_head.4} parent=5 // pred_region
        %s212 = ssub.s32 %s21, 1
        // Predicated region
        $region13: #{multi_attention_head.4} parent=11 // pred_check
          %p213 = pneg %p147
        $region14: #{multi_attention_head.4} parent=11 // pred_check_branch
          %215 = sbr.rel (%p213) target = $region16
        $region15: #{multi_attention_head.4} parent=11 // pred_region
          %s217 = ssub.s32 16, 16
          %218 = vsyncadd [#allocation11], %s217
          %s220 = sshll.u32 [#allocation10], 4
          %s221 = int_to_ptr.vmem [resolvable:$true] %s220
          %223 = dma.hbm_to_vmem [thread:$0]  %s3, 16, %s221, [#allocation11]
        $region16: #{multi_attention_head.4} parent=11 // pred_fallthru
          _
        // Predicated region
        $region17: #{multi_attention_head.4} parent=11 // pred_check
          %p224 = pneg %p168
        $region18: #{multi_attention_head.4} parent=11 // pred_check_branch
          %226 = sbr.rel (%p224) target = $region20
        $region19: #{multi_attention_head.4} parent=11 // pred_region
          %s228 = ssub.s32 16, 16
          %229 = vsyncadd [#allocation11], %s228
          %s231 = sshll.u32 [#allocation12], 4
          %s232 = int_to_ptr.vmem [resolvable:$true] %s231
          %234 = dma.hbm_to_vmem [thread:$0]  %s4, 16, %s232, [#allocation11]
        $region20: #{multi_attention_head.4} parent=11 // pred_fallthru
          _
      $region12: #{multi_attention_head.4} parent=5 // pred_fallthru
        _
      %p235 = scmp.lt.s32.totalorder %s21, 8
      // Predicated region
      $region21: #{multi_attention_head.4} parent=5 // pred_check
        %p236 = pneg %p235
      $region22: #{multi_attention_head.4} parent=5 // pred_check_branch
        %238 = sbr.rel (%p236) target = $region24
      $region23: #{multi_attention_head.4} parent=5 // pred_region
        // Predicated region
        $region25: #{multi_attention_head.4} parent=23 // pred_check
          %p239 = pneg %p64
        $region26: #{multi_attention_head.4} parent=23 // pred_check_branch
          %241 = sbr.rel (%p239) target = $region28
        $region27: #{multi_attention_head.4} parent=23 // pred_region
          %s242 = sand.u32 %s54, 1
          %s243 = scalar_lea.sflag [#allocation5], %s242
          %s244 = sand.u32 %s54, 1
          %s245 = smul.addr %s244, 8
          %s246 = scalar_lea.vmem [#allocation4], %s245
          %s248 = ssub.s32 128, 128
          %249 = vsyncadd %s243, %s248
          %s250 = sadd.s32 %s30, %s29
          %s251 = smul.addr %s28, 4
          %s252 = sadd.s32 %s250, %s251
          %s253 = smul.addr %s252, 128
          %s254 = scalar_lea.hbm %s0, %s253
          %s256 = sshll.u32 %s246, 4
          %s257 = int_to_ptr.vmem [resolvable:$true] %s256
          %259 = dma.hbm_to_vmem [thread:$0]  %s254, 128, %s257, %s243
        $region28: #{multi_attention_head.4} parent=23 // pred_fallthru
          _
        // Predicated region
        $region29: #{multi_attention_head.4} parent=23 // pred_check
          %p260 = pneg %p92
        $region30: #{multi_attention_head.4} parent=23 // pred_check_branch
          %262 = sbr.rel (%p260) target = $region32
        $region31: #{multi_attention_head.4} parent=23 // pred_region
          %s263 = sand.u32 %s21, 1
          %s264 = scalar_lea.sflag [#allocation8], %s263
          %s265 = sand.u32 %s82, 1
          %s266 = smul.addr %s265, 8
          %s267 = scalar_lea.vmem [#allocation7], %s266
          %s269 = ssub.s32 128, 128
          %270 = vsyncadd %s264, %s269
          %s271 = smul.addr %s28, 4
          %s272 = sadd.s32 %s29, %s271
          %s273 = smul.addr %s272, 128
          %s274 = scalar_lea.hbm %s1, %s273
          %s276 = sshll.u32 %s267, 4
          %s277 = int_to_ptr.vmem [resolvable:$true] %s276
          %279 = dma.hbm_to_vmem [thread:$0]  %s274, 128, %s277, %s264
        $region32: #{multi_attention_head.4} parent=23 // pred_fallthru
          _
        // Predicated region
        $region33: #{multi_attention_head.4} parent=23 // pred_check
          %p280 = pneg %p120
        $region34: #{multi_attention_head.4} parent=23 // pred_check_branch
          %282 = sbr.rel (%p280) target = $region36
        $region35: #{multi_attention_head.4} parent=23 // pred_region
          %s283 = sand.u32 %s21, 1
          %s284 = scalar_lea.sflag [#allocation8], %s283
          %s285 = sand.u32 %s110, 1
          %s286 = smul.addr %s285, 8
          %s287 = scalar_lea.vmem [#allocation9], %s286
          %s289 = ssub.s32 128, 128
          %290 = vsyncadd %s284, %s289
          %s291 = smul.addr %s28, 4
          %s292 = sadd.s32 %s29, %s291
          %s293 = smul.addr %s292, 128
          %s294 = scalar_lea.hbm %s2, %s293
          %s296 = sshll.u32 %s287, 4
          %s297 = int_to_ptr.vmem [resolvable:$true] %s296
          %299 = dma.hbm_to_vmem [thread:$0]  %s294, 128, %s297, %s284
        $region36: #{multi_attention_head.4} parent=23 // pred_fallthru
          _
      $region24: #{multi_attention_head.4} parent=5 // pred_fallthru
        _
      %p300 = scmp.le.s32.totalorder 1, %s21
      %p301 = scmp.lt.s32.totalorder %s21, 9
      %p302 = pnand %p300, %p301
      %p303 = pneg %p302
      // Predicated region
      $region37: #{multi_attention_head.4} parent=5 // pred_check
        _
      $region38: #{multi_attention_head.4} parent=5 // pred_check_branch
        %305 = sbr.rel (%p302) target = $region40
      $region39: #{multi_attention_head.4} parent=5 // pred_region
        %s306 = ssub.s32 %s21, 1
        %s307 = sand.u32 %s57, 1
        %s308 = scalar_lea.sflag [#allocation5], %s307
        %s309 = sand.u32 %s57, 1
        %s310 = smul.addr %s309, 8
        %s311 = scalar_lea.vmem [#allocation4], %s310
        // Predicated region
        $region41: #{multi_attention_head.4} parent=39 // pred_check
          %p312 = pneg %p70
        $region42: #{multi_attention_head.4} parent=39 // pred_check_branch
          %314 = sbr.rel (%p312) target = $region44
        $region43: #{multi_attention_head.4} parent=39 // pred_region
          %315 = dma.done %s308, 128
        $region44: #{multi_attention_head.4} parent=39 // pred_fallthru
          _
        %s316 = sand.u32 %s26, 1
        %s317 = scalar_lea.sflag [#allocation8], %s316
        %s318 = sand.u32 %s85, 1
        %s319 = smul.addr %s318, 8
        %s320 = scalar_lea.vmem [#allocation7], %s319
        // Predicated region
        $region45: #{multi_attention_head.4} parent=39 // pred_check
          %p321 = pneg %p98
        $region46: #{multi_attention_head.4} parent=39 // pred_check_branch
          %323 = sbr.rel (%p321) target = $region48
        $region47: #{multi_attention_head.4} parent=39 // pred_region
          %324 = dma.done %s317, 128
        $region48: #{multi_attention_head.4} parent=39 // pred_fallthru
          _
        %s325 = sand.u32 %s26, 1
        %s326 = scalar_lea.sflag [#allocation8], %s325
        %s327 = sand.u32 %s113, 1
        %s328 = smul.addr %s327, 8
        %s329 = scalar_lea.vmem [#allocation9], %s328
        // Predicated region
        $region49: #{multi_attention_head.4} parent=39 // pred_check
          %p330 = pneg %p126
        $region50: #{multi_attention_head.4} parent=39 // pred_check_branch
          %332 = sbr.rel (%p330) target = $region52
        $region51: #{multi_attention_head.4} parent=39 // pred_region
          %333 = dma.done %s326, 128
        $region52: #{multi_attention_head.4} parent=39 // pred_fallthru
          _
        // Predicated region
        $region53: #{multi_attention_head.4} parent=39 // pred_check
          %p334 = pneg %p147
        $region54: #{multi_attention_head.4} parent=39 // pred_check_branch
          %336 = sbr.rel (%p334) target = $region56
        $region55: #{multi_attention_head.4} parent=39 // pred_region
          %337 = dma.done [#allocation11], 16
        $region56: #{multi_attention_head.4} parent=39 // pred_fallthru
          _
        // Predicated region
        $region57: #{multi_attention_head.4} parent=39 // pred_check
          %p338 = pneg %p168
        $region58: #{multi_attention_head.4} parent=39 // pred_check_branch
          %340 = sbr.rel (%p338) target = $region60
        $region59: #{multi_attention_head.4} parent=39 // pred_region
          %341 = dma.done [#allocation11], 16
        $region60: #{multi_attention_head.4} parent=39 // pred_fallthru
          _
        %s342 = sand.u32 %s57, 1
        %s343 = scalar_lea.sflag [#allocation5], %s342
        %s344 = sand.u32 %s57, 1
        %s345 = smul.addr %s344, 8
        %s346 = scalar_lea.vmem [#allocation4], %s345
        %p347 = pneg %p70
        %p348 = pneg %p67
        %s349 = sand.u32 %s26, 1
        %s350 = scalar_lea.sflag [#allocation8], %s349
        %s351 = sand.u32 %s85, 1
        %s352 = smul.addr %s351, 8
        %s353 = scalar_lea.vmem [#allocation7], %s352
        %p354 = pneg %p98
        %p355 = pneg %p95
        %s356 = sand.u32 %s26, 1
        %s357 = scalar_lea.sflag [#allocation8], %s356
        %s358 = sand.u32 %s113, 1
        %s359 = smul.addr %s358, 8
        %s360 = scalar_lea.vmem [#allocation9], %s359
        %p361 = pneg %p126
        %p362 = pneg %p123
        %p363 = pneg %p147
        %p364 = pneg %p144
        %p365 = pneg %p168
        %p366 = pneg %p165
        %p367 = pneg %p198
        %p368 = pneg %p195
        %s369 = sand.u32 %s185, 1
        %s370 = scalar_lea.sflag [#allocation6], %s369
        %s371 = sand.u32 %s185, 1
        %s372 = smul.addr %s371, 8
        %s373 = scalar_lea.vmem [#allocation13], %s372
        %v374 = vld [vmem:[%s311] sm:$0xff]
        %s375 = sadd.s32 %s33, 1
        %s376 = smul.u32 %s375, 8
        %s377 = sadd.s32 %s376, 7
        %p378 = scmp.lt.s32.totalorder %s377, 0
        %s379 = ssub.s32 0, %s377
        %s380 = scalar_select %p378, %s379, %s377
        %s381 = sshrl.u32 %s380, 3
        %s382 = ssub.s32 0, %s381
        %s383 = scalar_select %p378, %s382, %s381
        %s384 = smul.u32 %s33, 8
        %v385 = vlaneseq
        %v386 = vshrl.u32 %v385, 7
        %v387 = vstv %s384
        %v388 = vadd.s32 %v387, %v386
        // While loop
        $region61: #{multi_attention_head.4} parent=39 // loop_pre_header
          _
        $region62: #{multi_attention_head.4} parent=39 // loop_header
          %s390 = sphi 0, %s392
          %p391 = scmp.ge.s32.totalorder %s390, %s383
          %v395 = vphi -inf, %v487
        $region63: #{multi_attention_head.4} parent=39 // loop_header_branch
          %394 = sbr.rel (%p391) target = $region67
        $region64: #{multi_attention_head.4} parent=39 // loop_body
          %s396 = smul.u32 %s390, 8
          %s397 = scalar_lea.vmem %s320, %s396 [#allocation7]
          %v398 = vld [vmem:[%s397] sm:$0xff]
          %vm399 = vcmask 64512
          %v401 = vsel %vm399, %v374, 0
          %v404 = vsel %vm399, %v398, 0
          %406 = vmatprep.subr.mxu0 0.0
          %407 = vmatpush1.xpose.msra.mxu0 %v404
          %408 = vmatprep.subr.mxu0 0.0
          %409 = vmatpush1.xpose.msra.mxu0 0.0
          %410 = vmatprep.subr.mxu0 0.0
          %411 = vmatpush1.xpose.msra.mxu0 0.0
          %412 = vmatprep.subr.mxu0 0.0
          %413 = vmatpush1.xpose.msra.mxu0 0.0
          %414 = vmatprep.subr.mxu0 0.0
          %415 = vmatpush1.xpose.msra.mxu0 0.0
          %416 = vmatprep.subr.mxu0 0.0
          %417 = vmatpush1.xpose.msra.mxu0 0.0
          %418 = vmatprep.subr.mxu0 0.0
          %419 = vmatpush1.xpose.msra.mxu0 0.0
          %420 = vmatprep.subr.mxu0 0.0
          %421 = vmatpush1.xpose.msra.mxu0 0.0
          %422 = vmatprep.subr.mxu0 0.0
          %423 = vmatpush1.xpose.msra.mxu0 0.0
          %424 = vmatprep.subr.mxu0 0.0
          %425 = vmatpush1.xpose.msra.mxu0 0.0
          %426 = vmatprep.subr.mxu0 0.0
          %427 = vmatpush1.xpose.msra.mxu0 0.0
          %428 = vmatprep.subr.mxu0 0.0
          %429 = vmatpush1.xpose.msra.mxu0 0.0
          %430 = vmatprep.subr.mxu0 0.0
          %431 = vmatpush1.xpose.msra.mxu0 0.0
          %432 = vmatprep.subr.mxu0 0.0
          %433 = vmatpush1.xpose.msra.mxu0 0.0
          %434 = vmatprep.subr.mxu0 0.0
          %435 = vmatpush1.xpose.msra.mxu0 0.0
          %436 = vmatprep.subr.mxu0 0.0
          %437 = vmatpush1.xpose.msra.mxu0 0.0
          %438 = vmatprep.subr.mxu0 0.0
          %439 = vmatpush1.xpose.msra.mxu0 0.0
          %440 = vmatprep.subr.mxu0 0.0
          %441 = vmatpush1.xpose.msra.mxu0 0.0
          %442 = vmatprep.subr.mxu0 0.0
          %443 = vmatpush1.xpose.msra.mxu0 0.0
          %444 = vmatprep.subr.mxu0 0.0
          %445 = vmatpush1.xpose.msra.mxu0 0.0
          %446 = vmatprep.subr.mxu0 0.0
          %447 = vmatpush1.xpose.msra.mxu0 0.0
          %448 = vmatprep.subr.mxu0 0.0
          %449 = vmatpush1.xpose.msra.mxu0 0.0
          %450 = vmatprep.subr.mxu0 0.0
          %451 = vmatpush1.xpose.msra.mxu0 0.0
          %452 = vmatprep.subr.mxu0 0.0
          %453 = vmatpush1.xpose.msra.mxu0 0.0
          %454 = vmatprep.subr.mxu0 0.0
          %455 = vmatpush1.xpose.msra.mxu0 0.0
          %456 = vmatprep.subr.mxu0 0.0
          %457 = vmatpush1.xpose.msra.mxu0 0.0
          %458 = vmatprep.subr.mxu0 0.0
          %459 = vmatpush1.xpose.msra.mxu0 0.0
          %460 = vmatprep.subr.mxu0 0.0
          %461 = vmatpush1.xpose.msra.mxu0 0.0
          %462 = vmatprep.subr.mxu0 0.0
          %463 = vmatpush1.xpose.msra.mxu0 0.0
          %464 = vmatprep.subr.mxu0 0.0
          %465 = vmatpush1.xpose.msra.mxu0 0.0
          %466 = vmatprep.subr.mxu0 0.0
          %467 = vmatpush1.xpose.msra.mxu0 0.0
          %468 = vmatprep.subr.mxu0 0.0
          %469 = vmatpush1.xpose.msra.mxu0 0.0
          %470 = vmatprep.mubr.f32.mxu0 0.0
          %471 = vmatmul.mubr.f32.gmra.mrb[0].mxu0 %v401
          %v472 = vpop.f32.mrb[0].mxu0
          %v473 = vadd.f32 0.0, %v472
          %v474 = vpop.f32.mrb[0].mxu0
          %475 = vdwg.mxu0
          %v476 = vlaneseq
          %v477 = vand.u32 %v476, 127
          %v478 = vstv %s396
          %v479 = vadd.s32 %v478, %v477
          %vm480 = vcmp.le.s32.totalorder %v479, %v388
          %v481 = vsel %vm480, %v473, -inf
          %s482 = scalar_lea.vmem [#allocation2], %s396
          %483 = vst.msk [vmem:[%s482] sm:$0xff] %vm399, %v481
          %v484 = vsel %vm399, %v481, -inf
          %485 = vmax.xlane.f32.xlu0 %v484
          %v486 = vpop.xlane.xlu0 %485
          %v487 = vmax.f32 %v395, %v486
        $region65: #{multi_attention_head.4} parent=39 // loop_footer
          %s392 = sadd.s32 %s390, 1
        $region66: #{multi_attention_head.4} parent=39 // loop_footer_branch
          %389 = sbr.rel target = $region62
        $region67: #{multi_attention_head.4} parent=39 // loop_exit
          _
        // While loop
        $region68: #{multi_attention_head.4} parent=39 // loop_pre_header
          _
        $region69: #{multi_attention_head.4} parent=39 // loop_header
          %s489 = sphi 0, %s491
          %p490 = scmp.ge.s32.totalorder %s489, %s383
          %v494 = vphi 0.0, %v506
        $region70: #{multi_attention_head.4} parent=39 // loop_header_branch
          %493 = sbr.rel (%p490) target = $region74
        $region71: #{multi_attention_head.4} parent=39 // loop_body
          %s495 = smul.u32 %s489, 8
          %s496 = scalar_lea.vmem [#allocation2], %s495
          %v497 = vld [vmem:[%s496] sm:$0xff]
          %v498 = vsub.f32 %v497, %v395
          %v499 = vmul.f32 %v498, 1.442695
          %v500 = vpow.pop %v499
          %vm501 = vcmask 64512
          %502 = vst.msk [vmem:[%s496] sm:$0xff] %vm501, %v500
          %v503 = vsel %vm501, %v500, 0.0
          %504 = vadd.xlane.f32.xlu0 %v503
          %v505 = vpop.xlane.xlu0 %504
          %v506 = vadd.f32 %v494, %v505
        $region72: #{multi_attention_head.4} parent=39 // loop_footer
          %s491 = sadd.s32 %s489, 1
        $region73: #{multi_attention_head.4} parent=39 // loop_footer_branch
          %488 = sbr.rel target = $region69
        $region74: #{multi_attention_head.4} parent=39 // loop_exit
          _
        %v507 = vrcp.pop %v494
        %v508 = vmul.f32 1.0, %v507
        %vm509 = vcmask 64512
        %510 = vst.msk [vmem:[#allocation3] sm:$0xff] %vm509, 0.0
        // While loop
        $region75: #{multi_attention_head.4} parent=39 // loop_pre_header
          _
        $region76: #{multi_attention_head.4} parent=39 // loop_header
          %s512 = sphi 0, %s514
          %p513 = scmp.ge.s32.totalorder %s512, %s383
        $region77: #{multi_attention_head.4} parent=39 // loop_header_branch
          %516 = sbr.rel (%p513) target = $region81
        $region78: #{multi_attention_head.4} parent=39 // loop_body
          %s517 = smul.u32 %s512, 8
          %s518 = scalar_lea.vmem [#allocation2], %s517
          %v519 = vld [vmem:[%s518] sm:$0xff]
          %v520 = vmul.f32 %v519, %v508
          %s521 = scalar_lea.vmem [#allocation10], %s512
          %v522 = vld [vmem:[%s521] sm:$0x1]
          %v524 = vlaneseq
          %v525 = vshrl.u32 %v524, 7
          %v526 = vsub.s32 0, %v525
          %v527 = vrot.slane %v522, %v526
          %v529 = vmul.f32 %v527, %v520
          %s530 = scalar_lea.vmem [#allocation12], %s512
          %v531 = vld [vmem:[%s530] sm:$0x1]
          %v533 = vlaneseq
          %v534 = vshrl.u32 %v533, 7
          %v535 = vsub.s32 0, %v534
          %v536 = vrot.slane %v531, %v535
          %v538 = vadd.f32 %v529, %v536
          %v539 = vand.u32 2147483647, %v538
          %vm540 = vcmp.le.f32.partialorder %v539, 0.7853982
          %vm541 = vcmp.lt.s32.totalorder %v538, 0
          %v542 = vand.u32 %v538, 2139095040
          %v543 = vshrl.u32 %v542, 23
          %v544 = vsub.s32 %v543, 127
          %v545 = vand.u32 2147483647, %v538
          %v546 = vand.u32 %v545, 8388607
          %v547 = vor.u32 %v546, 8388608
          %v548 = vsub.s32 0, %v547
          %v549 = vadd.s32 %v544, 1
          %vm550 = vcmp.gt.s32.totalorder %v549, 0
          %v551 = vsel %vm550, %v549, 0
          %v552 = vshrl.u32 %v551, 5
          %v553 = vand.u32 %v551, 31
          %v554 = vsub.s32 32, %v553
          %v555 = vshrl.u32 683565275, %v554
          %v556 = vshll.u32 683565275, %v553
          %v557 = vshrl.u32 2475754826, %v554
          %v558 = vor.u32 %v556, %v557
          %v559 = vshll.u32 2475754826, %v553
          %v560 = vshrl.u32 2131351028, %v554
          %v561 = vor.u32 %v559, %v560
          %v562 = vshll.u32 2131351028, %v553
          %v563 = vshrl.u32 2102212464, %v554
          %v564 = vor.u32 %v562, %v563
          %v565 = vshll.u32 2102212464, %v553
          %v566 = vshrl.u32 920167782, %v554
          %v567 = vor.u32 %v565, %v566
          %v568 = vshll.u32 920167782, %v553
          %v569 = vshrl.u32 1326507024, %v554
          %v570 = vor.u32 %v568, %v569
          %vm571 = vcmp.lt.s32.totalorder %v552, 1
          %vm572 = vcmp.lt.s32.totalorder %v552, 2
          %vm573 = vcmp.lt.s32.totalorder %v552, 3
          %vm574 = vcmp.lt.s32.totalorder %v552, 4
          %v575 = vsel %vm571, %v555, %v558
          %v576 = vsel %vm574, %v564, 2102212464
          %v577 = vsel %vm573, %v561, %v576
          %v578 = vsel %vm572, %v575, %v577
          %v579 = vsel %vm571, %v558, %v561
          %v580 = vsel %vm574, %v567, 920167782
          %v581 = vsel %vm573, %v564, %v580
          %v582 = vsel %vm572, %v579, %v581
          %v583 = vsel %vm571, %v561, %v564
          %v584 = vsel %vm574, %v570, 1326507024
          %v585 = vsel %vm573, %v567, %v584
          %v586 = vsel %vm572, %v583, %v585
          %v587 = vshll.u32 %v547, 8
          %v588 = vmul.u32.u64.compose %v587, %v586
          %v589 = vextract.low.u32 %v588
          %v590 = vextract.high.u32 %v588
          %v591 = vmul.u32.u64.compose %v587, %v582
          %v592 = vextract.low.u32 %v591
          %v593 = vextract.high.u32 %v591
          %v594 = vmul.u32 %v587, %v578
          %v595 = vadd.s32 %v590, %v592
          %vm596 = vc.u32 %v590, %v592
          %v597 = vadd.s32 %v593, 1
          %v598 = vsel %vm596, %v597, %v593
          %v599 = vadd.s32 %v594, %v598
          %v600 = vadd.s32 %v599, 536870912
          %v601 = vshrl.u32 %v600, 30
          %v602 = vshll.u32 %v601, 30
          %v603 = vsub.s32 %v599, %v602
          %vm604 = vcmp.lt.s32.totalorder %v603, 0
          %v605 = vsub.s32 0, %v603
          %v606 = vsel %vm604, %v605, %v603
          %v607 = vclz %v606
          %v608 = vsub.s32 %v607, 2
          %vm609 = vcmp.gt.s32.totalorder 0, %v608
          %v610 = vsel %vm609, 0, %v608
          %v611 = vsub.s32 32, %v610
          %v612 = vshll.u32 %v603, %v610
          %v613 = vshrl.u32 %v595, %v611
          %v614 = vor.u32 %v612, %v613
          %v615 = vsub.s32 4294967266, %v610
          %v616 = vadd.s32 %v615, 127
          %v617 = vshll.u32 %v616, 23
          %v618 = vor.u32 4788187, %v617
          %v619 = vand.u32 2147483647, %v618
          %v621 = vcvt.s32.f32 %v614
          %v622 = vmul.f32 %v621, %v619
          %v623 = vxor.u32 %v622, 2147483648
          %v624 = vsel %vm541, %v623, %v622
          %v625 = vsub.s32 4, %v601
          %v626 = vsel %vm541, %v625, %v601
          %v627 = vsel %vm540, %v538, %v624
          %v628 = vsel %vm540, 0, %v626
          %v629 = vcosq.f32.pop %v627
          %v630 = vsinq.f32.pop %v627
          %vm631 = vweird.f32 %v538
          %v632 = vand.u32 %v628, 3
          %vm633 = vcmp.lt.s32.totalorder %v632, 2
          %vm634 = vcmp.eq.s32.totalorder %v632, 0
          %v635 = vxor.u32 %v630, 2147483648
          %v636 = vsel %vm634, %v629, %v635
          %vm637 = vcmp.eq.s32.totalorder %v632, 2
          %v638 = vxor.u32 %v629, 2147483648
          %v639 = vsel %vm637, %v638, %v630
          %v640 = vsel %vm633, %v636, %v639
          %v641 = vsel %vm631, nan, %v640
          %v642 = vadd.f32 %v641, 1.0
          %v643 = vmul.f32 %v642, 0.5
          %v644 = vmul.f32 %v520, %v643
          %v645 = vld [vmem:[#allocation3] sm:$0xff]
          %s646 = scalar_lea.vmem %s329, %s517 [#allocation9]
          %v647 = vld [vmem:[%s646] sm:$0xff]
          %v649 = vsel %vm509, %v644, 0
          %651 = vmatprep.subr.mxu0 0.0
          %652 = vmatpush1.msra.mxu0 %v647
          %653 = vmatprep.subr.mxu0 0.0
          %654 = vmatpush1.msra.mxu0 0.0
          %655 = vmatprep.subr.mxu0 0.0
          %656 = vmatpush1.msra.mxu0 0.0
          %657 = vmatprep.subr.mxu0 0.0
          %658 = vmatpush1.msra.mxu0 0.0
          %659 = vmatprep.subr.mxu0 0.0
          %660 = vmatpush1.msra.mxu0 0.0
          %661 = vmatprep.subr.mxu0 0.0
          %662 = vmatpush1.msra.mxu0 0.0
          %663 = vmatprep.subr.mxu0 0.0
          %664 = vmatpush1.msra.mxu0 0.0
          %665 = vmatprep.subr.mxu0 0.0
          %666 = vmatpush1.msra.mxu0 0.0
          %667 = vmatprep.subr.mxu0 0.0
          %668 = vmatpush1.msra.mxu0 0.0
          %669 = vmatprep.subr.mxu0 0.0
          %670 = vmatpush1.msra.mxu0 0.0
          %671 = vmatprep.subr.mxu0 0.0
          %672 = vmatpush1.msra.mxu0 0.0
          %673 = vmatprep.subr.mxu0 0.0
          %674 = vmatpush1.msra.mxu0 0.0
          %675 = vmatprep.subr.mxu0 0.0
          %676 = vmatpush1.msra.mxu0 0.0
          %677 = vmatprep.subr.mxu0 0.0
          %678 = vmatpush1.msra.mxu0 0.0
          %679 = vmatprep.subr.mxu0 0.0
          %680 = vmatpush1.msra.mxu0 0.0
          %681 = vmatprep.subr.mxu0 0.0
          %682 = vmatpush1.msra.mxu0 0.0
          %683 = vmatprep.subr.mxu0 0.0
          %684 = vmatpush1.msra.mxu0 0.0
          %685 = vmatprep.subr.mxu0 0.0
          %686 = vmatpush1.msra.mxu0 0.0
          %687 = vmatprep.subr.mxu0 0.0
          %688 = vmatpush1.msra.mxu0 0.0
          %689 = vmatprep.subr.mxu0 0.0
          %690 = vmatpush1.msra.mxu0 0.0
          %691 = vmatprep.subr.mxu0 0.0
          %692 = vmatpush1.msra.mxu0 0.0
          %693 = vmatprep.subr.mxu0 0.0
          %694 = vmatpush1.msra.mxu0 0.0
          %695 = vmatprep.subr.mxu0 0.0
          %696 = vmatpush1.msra.mxu0 0.0
          %697 = vmatprep.subr.mxu0 0.0
          %698 = vmatpush1.msra.mxu0 0.0
          %699 = vmatprep.subr.mxu0 0.0
          %700 = vmatpush1.msra.mxu0 0.0
          %701 = vmatprep.subr.mxu0 0.0
          %702 = vmatpush1.msra.mxu0 0.0
          %703 = vmatprep.subr.mxu0 0.0
          %704 = vmatpush1.msra.mxu0 0.0
          %705 = vmatprep.subr.mxu0 0.0
          %706 = vmatpush1.msra.mxu0 0.0
          %707 = vmatprep.subr.mxu0 0.0
          %708 = vmatpush1.msra.mxu0 0.0
          %709 = vmatprep.subr.mxu0 0.0
          %710 = vmatpush1.msra.mxu0 0.0
          %711 = vmatprep.subr.mxu0 0.0
          %712 = vmatpush1.msra.mxu0 0.0
          %713 = vmatprep.subr.mxu0 0.0
          %714 = vmatpush1.msra.mxu0 0.0
          %715 = vmatprep.mubr.f32.mxu0 0.0
          %716 = vmatmul.mubr.f32.gmra.mrb[0].mxu0 %v649
          %v717 = vpop.f32.mrb[0].mxu0
          %v718 = vadd.f32 0.0, %v717
          %v719 = vpop.f32.mrb[0].mxu0
          %720 = vdwg.mxu0
          %v721 = vadd.f32 %v645, %v718
          %722 = vst.msk [vmem:[#allocation3] sm:$0xff] %vm509, %v721
        $region79: #{multi_attention_head.4} parent=39 // loop_footer
          %s514 = sadd.s32 %s512, 1
        $region80: #{multi_attention_head.4} parent=39 // loop_footer_branch
          %511 = sbr.rel target = $region76
        $region81: #{multi_attention_head.4} parent=39 // loop_exit
          _
        %v723 = vld [vmem:[#allocation3] sm:$0xff]
        %724 = vst.msk [vmem:[%s373] sm:$0xff] %vm509, %v723
        %s725 = sand.u32 %s185, 1
        %s726 = scalar_lea.sflag [#allocation6], %s725
        %s727 = sand.u32 %s185, 1
        %s728 = smul.addr %s727, 8
        %s729 = scalar_lea.vmem [#allocation13], %s728
        // Predicated region
        $region82: #{multi_attention_head.4} parent=39 // pred_check
          %p730 = pneg %p195
        $region83: #{multi_attention_head.4} parent=39 // pred_check_branch
          %732 = sbr.rel (%p730) target = $region85
        $region84: #{multi_attention_head.4} parent=39 // pred_region
          %s734 = ssub.s32 128, 128
          %735 = vsyncadd %s726, %s734
          %s736 = sadd.s32 %s33, %s32
          %s737 = smul.addr %s31, 4
          %s738 = sadd.s32 %s736, %s737
          %s739 = smul.addr %s738, 128
          %s740 = scalar_lea.hbm %s5, %s739
          %s742 = sshll.u32 %s729, 4
          %s743 = int_to_ptr.vmem [resolvable:$true] %s742
          %745 = dma.vmem_to_hbm [thread:$0]  %s743, 128, %s740, %s726
        $region85: #{multi_attention_head.4} parent=39 // pred_fallthru
          _
      $region40: #{multi_attention_head.4} parent=5 // pred_fallthru
        _
      %p746 = scmp.le.s32.totalorder 2, %s21
      // Predicated region
      $region86: #{multi_attention_head.4} parent=5 // pred_check
        %p747 = pneg %p746
      $region87: #{multi_attention_head.4} parent=5 // pred_check_branch
        %749 = sbr.rel (%p747) target = $region89
      $region88: #{multi_attention_head.4} parent=5 // pred_region
        %s750 = ssub.s32 %s21, 2
        // Predicated region
        $region90: #{multi_attention_head.4} parent=88 // pred_check
          %p751 = pneg %p201
        $region91: #{multi_attention_head.4} parent=88 // pred_check_branch
          %753 = sbr.rel (%p751) target = $region93
        $region92: #{multi_attention_head.4} parent=88 // pred_region
          %s754 = sand.u32 %s186, 1
          %s755 = scalar_lea.sflag [#allocation6], %s754
          %s756 = sand.u32 %s186, 1
          %s757 = smul.addr %s756, 8
          %s758 = scalar_lea.vmem [#allocation13], %s757
          %759 = dma.done %s755, 128
        $region93: #{multi_attention_head.4} parent=88 // pred_fallthru
          _
      $region89: #{multi_attention_head.4} parent=5 // pred_fallthru
        _
    $region6: #{multi_attention_head.4} parent=1 // loop_footer
      %s25 = sadd.s32 1, %s21
    $region7: #{multi_attention_head.4} parent=1 // loop_footer_branch
      %20 = sbr.rel target = $region3
    $region8: #{multi_attention_head.4} parent=1 // loop_exit
      _
    %760 = vsyncpa [#allocation5], 1
    %s761 = scalar_lea.sflag [#allocation5], 1
    %762 = vsyncpa %s761, 1
    %763 = vsyncpa [#allocation8], 1
    %s764 = scalar_lea.sflag [#allocation8], 1
    %765 = vsyncpa %s764, 1
    %766 = vsyncpa [#allocation11], 1
    %767 = vsyncpa [#allocation6], 1
    %s768 = scalar_lea.sflag [#allocation6], 1
    %769 = vsyncpa %s768, 1

</llo_original>
